<compile_context>
chip_gen: v5e
topology: v5e:2x2
jax: 0.10.0
libtpu: 0.0.40
codegen_flags: <defaults>
</compile_context>

<pallas_src>
import jax
import jax.numpy as jnp
from jax import lax
from jax.experimental import pallas as pl
from jax.experimental.pallas import tpu as pltpu

NEG_SLOPE = 0.01              # nn.LeakyReLU default
EPS = 1e-5                    # nn.InstanceNorm2d default
COMPUTE_DTYPE = jnp.bfloat16  # MXU / HBM-stream dtype; stats, norm and output stay f32
_LP = 8                       # sublane-aligned interior column offset in the pad scratch


# --------------- fused kernel: conv1(s2) -> conv2(s1) -> InstanceNorm -> LeakyReLU -------
def _make_kernel(*, C, Ho, Wo, use_slab):
    S = Ho * Wo

    def kernel(xph_ref, w1_ref, w2_ref, o_ref, pad_ref, *slab):
        # xph_ref: (1, 4, Ho+1, Wo+1, C) bf16  phase-split zero-padded input (NHWC);
        #                                      phase p = (kh & 1) * 2 + (kw & 1)
        # w1_ref/w2_ref: (9, C, C) bf16        per-tap weights, tap t = kh*3 + kw
        # o_ref:   (1, S, C) if use_slab else (1, C, S)   f32 output block
        # pad_ref: VMEM (Ho+2, Wo+9, C) bf16   conv1 output with halo; interior at col _LP
        # slab:    optional VMEM (Ho, Wo, 9C) bf16 im2col slab (only when C % 128 == 0)

        # ---- conv1 (3x3, stride 2, pad 1) ------------------------------------------------
        # Phase split made the stride-2 taps unit-stride: tap (kh, kw) lives in phase
        # p = (kh&1)*2 + (kw&1) at offset (kh//2, kw//2).  Stage one kw-shifted source per
        # (phase, dw) (6 shifted loads, not 9); the kh offset is a free leading-axis slice.
        def conv1():
            if use_slab:
                slab_ref = slab[0]
                for kw in range(3):
                    b, dw = kw & 1, kw // 2
                    for a in (0, 1):
                        src = xph_ref[0, 2 * a + b, :, dw:dw + Wo, :]   # (Ho+1, Wo, C)
                        for kh in (k for k in range(3) if (k & 1) == a):
                            t = kh * 3 + kw
                            slab_ref[:, :, t * C:(t + 1) * C] = src[kh // 2:kh // 2 + Ho]
                return jnp.dot(slab_ref[...].reshape(S, 9 * C),
                               w1_ref[...].reshape(9 * C, C),
                               preferred_element_type=jnp.float32)       # (S, C) f32
            acc = None
            for kw in range(3):
                b, dw = kw & 1, kw // 2
                for a in (0, 1):
                    src = xph_ref[0, 2 * a + b, :, dw:dw + Wo, :]        # (Ho+1, Wo, C)
                    for kh in (k for k in range(3) if (k & 1) == a):
                        tap = src[kh // 2:kh // 2 + Ho]                  # free leading slice
                        d = jnp.dot(tap.reshape(S, C), w1_ref[kh * 3 + kw],
                                    preferred_element_type=jnp.float32)
                        acc = d if acc is None else acc + d
            return acc                                                   # (S, C) f32

        y1 = conv1()

        # ---- zero-pad conv1 output: halo-only zeroing, interior fully overwritten --------
        # Interior sits at column offset _LP (=8) -> sublane-aligned full-width store.
        zero_row = jnp.zeros((1, Wo + 2, C), COMPUTE_DTYPE)
        zero_col = jnp.zeros((Ho + 2, 1, C), COMPUTE_DTYPE)
        pad_ref[0:1, _LP - 1:_LP + Wo + 1, :] = zero_row                 # top halo row
        pad_ref[Ho + 1:Ho + 2, _LP - 1:_LP + Wo + 1, :] = zero_row       # bottom halo row
        pad_ref[:, _LP - 1:_LP, :] = zero_col                            # left halo col
        pad_ref[:, _LP + Wo:_LP + Wo + 1, :] = zero_col                  # right halo col
        pad_ref[1:Ho + 1, _LP:_LP + Wo, :] = y1.reshape(Ho, Wo, C).astype(COMPUTE_DTYPE)

        # ---- conv2 (3x3, stride 1, pad 1): 3 kw-shifted sources, kh slice is free --------
        def conv2():
            if use_slab:
                slab_ref = slab[0]
                for kw in range(3):
                    src = pad_ref[:, _LP - 1 + kw:_LP - 1 + kw + Wo, :]  # (Ho+2, Wo, C)
                    for kh in range(3):
                        t = kh * 3 + kw
                        slab_ref[:, :, t * C:(t + 1) * C] = src[kh:kh + Ho]
                return jnp.dot(slab_ref[...].reshape(S, 9 * C),
                               w2_ref[...].reshape(9 * C, C),
                               preferred_element_type=jnp.float32)       # (S, C) f32
            acc = None
            for kw in range(3):
                src = pad_ref[:, _LP - 1 + kw:_LP - 1 + kw + Wo, :]      # (Ho+2, Wo, C)
                for kh in range(3):
                    tap = src[kh:kh + Ho]                                # free leading slice
                    d = jnp.dot(tap.reshape(S, C), w2_ref[kh * 3 + kw],
                                preferred_element_type=jnp.float32)
                    acc = d if acc is None else acc + d
            return acc                                                   # (S, C) f32

        y2 = conv2()

        # ---- InstanceNorm2d (affine=False): two-pass stats in f32, then LeakyReLU --------
        inv_s = 1.0 / S
        mean = jnp.sum(y2, axis=0, keepdims=True) * inv_s                # (1, C)
        cent = y2 - mean
        var = jnp.sum(cent * cent, axis=0, keepdims=True) * inv_s        # biased variance
        y = cent * lax.rsqrt(var + EPS)
        y = jnp.where(y > 0, y, NEG_SLOPE * y)

        if use_slab:
            # C % 128 == 0: write NHWC (S, C) directly — no in-kernel XLU transpose.
            o_ref[0] = y.astype(o_ref.dtype)
        else:
            # small C: (C, S) keeps the lane axis dense (S lanes instead of C).
            o_ref[0] = jnp.transpose(y, (1, 0)).astype(o_ref.dtype)

    return kernel


def downsample2d_pallas(x_nchw, w1, w2):
    """w1, w2: (3, 3, Cin, Cout) — same math as torch Conv2d weights (Cout, Cin, 3, 3)."""
    N, C, H, W = x_nchw.shape
    assert H % 2 == 0 and W % 2 == 0, "downsample expects even spatial dims"
    Ho, Wo = H // 2, W // 2
    S = Ho * Wo
    use_slab = (C % 128 == 0)   # lane-aligned slab columns only when C is a lane multiple

    # NCHW -> NHWC (bf16) + pad(1) + space-to-depth phase split as ONE dense
    # reshape+transpose pass (~1x input bytes, half of that in bf16).
    x = jnp.transpose(x_nchw, (0, 2, 3, 1)).astype(COMPUTE_DTYPE)        # (N, H, W, C)
    xp = jnp.pad(x, ((0, 0), (1, 1), (1, 1), (0, 0)))                    # (N, H+2, W+2, C)
    xph = (xp.reshape(N, Ho + 1, 2, Wo + 1, 2, C)
             .transpose(0, 2, 4, 1, 3, 5)
             .reshape(N, 4, Ho + 1, Wo + 1, C))                          # (N, 4, Ho+1, Wo+1, C)

    w1f = w1.reshape(9, C, C).astype(COMPUTE_DTYPE)                      # tap t = kh*3 + kw
    w2f = w2.reshape(9, C, C).astype(COMPUTE_DTYPE)

    kernel = _make_kernel(C=C, Ho=Ho, Wo=Wo, use_slab=use_slab)

    if use_slab:
        out_shape = jax.ShapeDtypeStruct((N, S, C), jnp.float32)
        out_spec = pl.BlockSpec((1, S, C), lambda n: (n, 0, 0))
    else:
        out_shape = jax.ShapeDtypeStruct((N, C, S), jnp.float32)
        out_spec = pl.BlockSpec((1, C, S), lambda n: (n, 0, 0))

    scratch = [pltpu.VMEM((Ho + 2, Wo + 9, C), COMPUTE_DTYPE)]           # padded conv1 out
    if use_slab:
        scratch.append(pltpu.VMEM((Ho, Wo, 9 * C), COMPUTE_DTYPE))       # im2col slab

    # Per-step VMEM footprint (double-buffered I/O + scratch) with headroom; floor 32 MiB
    # (valid scoped default everywhere), cap 64 MiB (v7x physical).  Raise toward 96-128 MiB
    # on v5e/v6e for large H*W before resorting to strip-tiling.
    bpe = jnp.dtype(COMPUTE_DTYPE).itemsize
    est = (2 * 4 * (Ho + 1) * (Wo + 1) * C * bpe          # double-buffered input block
           + 2 * 2 * 9 * C * C * bpe                      # two weight tensors
           + 2 * C * S * 4                                # double-buffered f32 output block
           + (Ho + 2) * (Wo + 9) * C * bpe                # pad scratch
           + (S * 9 * C * bpe if use_slab else 0))        # slab scratch
    vmem_limit = int(min(max(4 * est, 32 << 20), 64 << 20))

    out = pl.pallas_call(
        kernel,
        out_shape=out_shape,
        grid=(N,),
        in_specs=[
            pl.BlockSpec((1, 4, Ho + 1, Wo + 1, C), lambda n: (n, 0, 0, 0, 0)),
            pl.BlockSpec((9, C, C), lambda n: (0, 0, 0)),
            pl.BlockSpec((9, C, C), lambda n: (0, 0, 0)),
        ],
        out_specs=out_spec,
        scratch_shapes=scratch,
        compiler_params=pltpu.CompilerParams(
            dimension_semantics=("parallel",),             # batch axis -> megacore-shardable
            vmem_limit_bytes=vmem_limit,
        ),
    )(xph, w1f, w2f)

    if use_slab:
        return jnp.transpose(out.reshape(N, Ho, Wo, C), (0, 3, 1, 2))    # one XLA transpose
    return out.reshape(N, C, Ho, Wo)                                     # free metadata reshape


downsample2d = jax.jit(downsample2d_pallas)


# ----------------------------- pure-JAX f32 reference for checking -----------------------
def _reference(x_nchw, w1, w2):
    dn = ("NCHW", "OIHW", "NCHW")
    w1_oihw = jnp.transpose(w1, (3, 2, 0, 1))
    w2_oihw = jnp.transpose(w2, (3, 2, 0, 1))
    y = lax.conv_general_dilated(x_nchw, w1_oihw, (2, 2), ((1, 1), (1, 1)),
                                 dimension_numbers=dn, precision=lax.Precision.HIGHEST)
    y = lax.conv_general_dilated(y, w2_oihw, (1, 1), ((1, 1), (1, 1)),
                                 dimension_numbers=dn, precision=lax.Precision.HIGHEST)
    mean = jnp.mean(y, axis=(2, 3), keepdims=True)
    var = jnp.var(y, axis=(2, 3), keepdims=True)
    y = (y - mean) / jnp.sqrt(var + EPS)
    return jnp.where(y > 0, y, NEG_SLOPE * y)


if __name__ == "__main__":
    N, C, H, W = 2, 8, 16, 16
    key = jax.random.PRNGKey(0)
    kx, k1, k2 = jax.random.split(key, 3)
    x = jax.random.normal(kx, (N, C, H, W), jnp.float32)
    # deterministic synthetic weights; shapes implied by nn.Conv2d(C, C, 3, bias=False)
    w1 = 0.1 * jax.random.normal(k1, (3, 3, C, C), jnp.float32)   # conv1 (stride 2)
    w2 = 0.1 * jax.random.normal(k2, (3, 3, C, C), jnp.float32)   # conv2 (stride 1)

    out = jax.block_until_ready(downsample2d(x, w1, w2))
    assert out.shape == (N, C, H // 2, W // 2), out.shape

    # bf16 MXU/stream path validated against the f32 HIGHEST-precision reference.
    ref = _reference(x, w1, w2)
    max_err = float(jnp.max(jnp.abs(out - ref)))
    assert jnp.allclose(out, ref, atol=5e-2, rtol=5e-2), max_err

    print("KERNEL_OK")
</pallas_src>

<mosaic_0001>
module attributes {stable_mosaic.version = 11 : i64} {
  func.func @kernel(%arg0: i32, %arg1: memref<1x4x9x9x8xbf16, #tpu.memory_space<vmem>>, %arg2: memref<9x8x8xbf16, #tpu.memory_space<vmem>>, %arg3: memref<9x8x8xbf16, #tpu.memory_space<vmem>>, %arg4: memref<1x8x64xf32, #tpu.memory_space<vmem>>, %arg5: memref<10x17x8xbf16, #tpu.memory_space<vmem>>) attributes {dimension_semantics = [#tpu.dimension_semantics<parallel>], iteration_bounds = array<i64: 2>, scalar_prefetch = 0 : i64, scratch_operands = 1 : i64, tpu.core_type = #tpu.core_type<tc>, window_params = [{transform_indices = @transform_0, window_bounds = array<i64: 1, 4, 9, 9, 8>}, {pipeline_mode = #tpu.pipeline_mode<synchronous>, transform_indices = @transform_1, window_bounds = array<i64: 9, 8, 8>}, {pipeline_mode = #tpu.pipeline_mode<synchronous>, transform_indices = @transform_2, window_bounds = array<i64: 9, 8, 8>}, {transform_indices = @transform_3, window_bounds = array<i64: 1, 8, 64>}]} {
    %c0 = arith.constant 0 : index
    %c0_0 = arith.constant 0 : index
    %c0_1 = arith.constant 0 : index
    %c0_2 = arith.constant 0 : index
    %c0_3 = arith.constant 0 : index
    %0 = vector.load %arg1[%c0, %c0_0, %c0_1, %c0_2, %c0_3] : memref<1x4x9x9x8xbf16, #tpu.memory_space<vmem>>, vector<1x1x9x8x8xbf16>
    %1 = vector.shape_cast %0 : vector<1x1x9x8x8xbf16> to vector<9x8x8xbf16>
    %2 = vector.extract_strided_slice %1 {offsets = [0, 0, 0], sizes = [8, 8, 8], strides = [1, 1, 1]} : vector<9x8x8xbf16> to vector<8x8x8xbf16>
    %3 = vector.shape_cast %2 : vector<8x8x8xbf16> to vector<64x8xbf16>
    %c0_4 = arith.constant 0 : index
    %c0_5 = arith.constant 0 : index
    %c0_6 = arith.constant 0 : index
    %4 = vector.load %arg2[%c0_4, %c0_5, %c0_6] : memref<9x8x8xbf16, #tpu.memory_space<vmem>>, vector<1x8x8xbf16>
    %5 = vector.shape_cast %4 : vector<1x8x8xbf16> to vector<8x8xbf16>
    %cst = arith.constant dense<0.000000e+00> : vector<64x8xf32>
    %6 = tpu.matmul %3, %5, %cst {dimension_numbers = #tpu.dot_dimension_numbers<[1], [0], [0], [1], [0, 0, 1, 1], [], []>} : vector<64x8xbf16>, vector<8x8xbf16>, vector<64x8xf32> -> vector<64x8xf32>
    %7 = vector.extract_strided_slice %1 {offsets = [1, 0, 0], sizes = [8, 8, 8], strides = [1, 1, 1]} : vector<9x8x8xbf16> to vector<8x8x8xbf16>
    %8 = vector.shape_cast %7 : vector<8x8x8xbf16> to vector<64x8xbf16>
    %c6 = arith.constant 6 : index
    %c0_7 = arith.constant 0 : index
    %c0_8 = arith.constant 0 : index
    %9 = vector.load %arg2[%c6, %c0_7, %c0_8] : memref<9x8x8xbf16, #tpu.memory_space<vmem>>, vector<1x8x8xbf16>
    %10 = vector.shape_cast %9 : vector<1x8x8xbf16> to vector<8x8xbf16>
    %cst_9 = arith.constant dense<0.000000e+00> : vector<64x8xf32>
    %11 = tpu.matmul %8, %10, %cst_9 {dimension_numbers = #tpu.dot_dimension_numbers<[1], [0], [0], [1], [0, 0, 1, 1], [], []>} : vector<64x8xbf16>, vector<8x8xbf16>, vector<64x8xf32> -> vector<64x8xf32>
    %12 = arith.addf %6, %11 : vector<64x8xf32>
    %c0_10 = arith.constant 0 : index
    %c2 = arith.constant 2 : index
    %c0_11 = arith.constant 0 : index
    %c0_12 = arith.constant 0 : index
    %c0_13 = arith.constant 0 : index
    %13 = vector.load %arg1[%c0_10, %c2, %c0_11, %c0_12, %c0_13] : memref<1x4x9x9x8xbf16, #tpu.memory_space<vmem>>, vector<1x1x9x8x8xbf16>
    %14 = vector.shape_cast %13 : vector<1x1x9x8x8xbf16> to vector<9x8x8xbf16>
    %15 = vector.extract_strided_slice %14 {offsets = [0, 0, 0], sizes = [8, 8, 8], strides = [1, 1, 1]} : vector<9x8x8xbf16> to vector<8x8x8xbf16>
    %16 = vector.shape_cast %15 : vector<8x8x8xbf16> to vector<64x8xbf16>
    %c3 = arith.constant 3 : index
    %c0_14 = arith.constant 0 : index
    %c0_15 = arith.constant 0 : index
    %17 = vector.load %arg2[%c3, %c0_14, %c0_15] : memref<9x8x8xbf16, #tpu.memory_space<vmem>>, vector<1x8x8xbf16>
    %18 = vector.shape_cast %17 : vector<1x8x8xbf16> to vector<8x8xbf16>
    %cst_16 = arith.constant dense<0.000000e+00> : vector<64x8xf32>
    %19 = tpu.matmul %16, %18, %cst_16 {dimension_numbers = #tpu.dot_dimension_numbers<[1], [0], [0], [1], [0, 0, 1, 1], [], []>} : vector<64x8xbf16>, vector<8x8xbf16>, vector<64x8xf32> -> vector<64x8xf32>
    %20 = arith.addf %12, %19 : vector<64x8xf32>
    %c0_17 = arith.constant 0 : index
    %c1 = arith.constant 1 : index
    %c0_18 = arith.constant 0 : index
    %c0_19 = arith.constant 0 : index
    %c0_20 = arith.constant 0 : index
    %21 = vector.load %arg1[%c0_17, %c1, %c0_18, %c0_19, %c0_20] : memref<1x4x9x9x8xbf16, #tpu.memory_space<vmem>>, vector<1x1x9x8x8xbf16>
    %22 = vector.shape_cast %21 : vector<1x1x9x8x8xbf16> to vector<9x8x8xbf16>
    %23 = vector.extract_strided_slice %22 {offsets = [0, 0, 0], sizes = [8, 8, 8], strides = [1, 1, 1]} : vector<9x8x8xbf16> to vector<8x8x8xbf16>
    %24 = vector.shape_cast %23 : vector<8x8x8xbf16> to vector<64x8xbf16>
    %c1_21 = arith.constant 1 : index
    %c0_22 = arith.constant 0 : index
    %c0_23 = arith.constant 0 : index
    %25 = vector.load %arg2[%c1_21, %c0_22, %c0_23] : memref<9x8x8xbf16, #tpu.memory_space<vmem>>, vector<1x8x8xbf16>
    %26 = vector.shape_cast %25 : vector<1x8x8xbf16> to vector<8x8xbf16>
    %cst_24 = arith.constant dense<0.000000e+00> : vector<64x8xf32>
    %27 = tpu.matmul %24, %26, %cst_24 {dimension_numbers = #tpu.dot_dimension_numbers<[1], [0], [0], [1], [0, 0, 1, 1], [], []>} : vector<64x8xbf16>, vector<8x8xbf16>, vector<64x8xf32> -> vector<64x8xf32>
    %28 = arith.addf %20, %27 : vector<64x8xf32>
    %29 = vector.extract_strided_slice %22 {offsets = [1, 0, 0], sizes = [8, 8, 8], strides = [1, 1, 1]} : vector<9x8x8xbf16> to vector<8x8x8xbf16>
    %30 = vector.shape_cast %29 : vector<8x8x8xbf16> to vector<64x8xbf16>
    %c7 = arith.constant 7 : index
    %c0_25 = arith.constant 0 : index
    %c0_26 = arith.constant 0 : index
    %31 = vector.load %arg2[%c7, %c0_25, %c0_26] : memref<9x8x8xbf16, #tpu.memory_space<vmem>>, vector<1x8x8xbf16>
    %32 = vector.shape_cast %31 : vector<1x8x8xbf16> to vector<8x8xbf16>
    %cst_27 = arith.constant dense<0.000000e+00> : vector<64x8xf32>
    %33 = tpu.matmul %30, %32, %cst_27 {dimension_numbers = #tpu.dot_dimension_numbers<[1], [0], [0], [1], [0, 0, 1, 1], [], []>} : vector<64x8xbf16>, vector<8x8xbf16>, vector<64x8xf32> -> vector<64x8xf32>
    %34 = arith.addf %28, %33 : vector<64x8xf32>
    %c0_28 = arith.constant 0 : index
    %c3_29 = arith.constant 3 : index
    %c0_30 = arith.constant 0 : index
    %c0_31 = arith.constant 0 : index
    %c0_32 = arith.constant 0 : index
    %35 = vector.load %arg1[%c0_28, %c3_29, %c0_30, %c0_31, %c0_32] : memref<1x4x9x9x8xbf16, #tpu.memory_space<vmem>>, vector<1x1x9x8x8xbf16>
    %36 = vector.shape_cast %35 : vector<1x1x9x8x8xbf16> to vector<9x8x8xbf16>
    %37 = vector.extract_strided_slice %36 {offsets = [0, 0, 0], sizes = [8, 8, 8], strides = [1, 1, 1]} : vector<9x8x8xbf16> to vector<8x8x8xbf16>
    %38 = vector.shape_cast %37 : vector<8x8x8xbf16> to vector<64x8xbf16>
    %c4 = arith.constant 4 : index
    %c0_33 = arith.constant 0 : index
    %c0_34 = arith.constant 0 : index
    %39 = vector.load %arg2[%c4, %c0_33, %c0_34] : memref<9x8x8xbf16, #tpu.memory_space<vmem>>, vector<1x8x8xbf16>
    %40 = vector.shape_cast %39 : vector<1x8x8xbf16> to vector<8x8xbf16>
    %cst_35 = arith.constant dense<0.000000e+00> : vector<64x8xf32>
    %41 = tpu.matmul %38, %40, %cst_35 {dimension_numbers = #tpu.dot_dimension_numbers<[1], [0], [0], [1], [0, 0, 1, 1], [], []>} : vector<64x8xbf16>, vector<8x8xbf16>, vector<64x8xf32> -> vector<64x8xf32>
    %42 = arith.addf %34, %41 : vector<64x8xf32>
    %c0_36 = arith.constant 0 : index
    %c0_37 = arith.constant 0 : index
    %c0_38 = arith.constant 0 : index
    %c1_39 = arith.constant 1 : index
    %c0_40 = arith.constant 0 : index
    %43 = vector.load %arg1[%c0_36, %c0_37, %c0_38, %c1_39, %c0_40] : memref<1x4x9x9x8xbf16, #tpu.memory_space<vmem>>, vector<1x1x9x8x8xbf16>
    %44 = vector.shape_cast %43 : vector<1x1x9x8x8xbf16> to vector<9x8x8xbf16>
    %45 = vector.extract_strided_slice %44 {offsets = [0, 0, 0], sizes = [8, 8, 8], strides = [1, 1, 1]} : vector<9x8x8xbf16> to vector<8x8x8xbf16>
    %46 = vector.shape_cast %45 : vector<8x8x8xbf16> to vector<64x8xbf16>
    %c2_41 = arith.constant 2 : index
    %c0_42 = arith.constant 0 : index
    %c0_43 = arith.constant 0 : index
    %47 = vector.load %arg2[%c2_41, %c0_42, %c0_43] : memref<9x8x8xbf16, #tpu.memory_space<vmem>>, vector<1x8x8xbf16>
    %48 = vector.shape_cast %47 : vector<1x8x8xbf16> to vector<8x8xbf16>
    %cst_44 = arith.constant dense<0.000000e+00> : vector<64x8xf32>
    %49 = tpu.matmul %46, %48, %cst_44 {dimension_numbers = #tpu.dot_dimension_numbers<[1], [0], [0], [1], [0, 0, 1, 1], [], []>} : vector<64x8xbf16>, vector<8x8xbf16>, vector<64x8xf32> -> vector<64x8xf32>
    %50 = arith.addf %42, %49 : vector<64x8xf32>
    %51 = vector.extract_strided_slice %44 {offsets = [1, 0, 0], sizes = [8, 8, 8], strides = [1, 1, 1]} : vector<9x8x8xbf16> to vector<8x8x8xbf16>
    %52 = vector.shape_cast %51 : vector<8x8x8xbf16> to vector<64x8xbf16>
    %c8 = arith.constant 8 : index
    %c0_45 = arith.constant 0 : index
    %c0_46 = arith.constant 0 : index
    %53 = vector.load %arg2[%c8, %c0_45, %c0_46] : memref<9x8x8xbf16, #tpu.memory_space<vmem>>, vector<1x8x8xbf16>
    %54 = vector.shape_cast %53 : vector<1x8x8xbf16> to vector<8x8xbf16>
    %cst_47 = arith.constant dense<0.000000e+00> : vector<64x8xf32>
    %55 = tpu.matmul %52, %54, %cst_47 {dimension_numbers = #tpu.dot_dimension_numbers<[1], [0], [0], [1], [0, 0, 1, 1], [], []>} : vector<64x8xbf16>, vector<8x8xbf16>, vector<64x8xf32> -> vector<64x8xf32>
    %56 = arith.addf %50, %55 : vector<64x8xf32>
    %c0_48 = arith.constant 0 : index
    %c2_49 = arith.constant 2 : index
    %c0_50 = arith.constant 0 : index
    %c1_51 = arith.constant 1 : index
    %c0_52 = arith.constant 0 : index
    %57 = vector.load %arg1[%c0_48, %c2_49, %c0_50, %c1_51, %c0_52] : memref<1x4x9x9x8xbf16, #tpu.memory_space<vmem>>, vector<1x1x9x8x8xbf16>
    %58 = vector.shape_cast %57 : vector<1x1x9x8x8xbf16> to vector<9x8x8xbf16>
    %59 = vector.extract_strided_slice %58 {offsets = [0, 0, 0], sizes = [8, 8, 8], strides = [1, 1, 1]} : vector<9x8x8xbf16> to vector<8x8x8xbf16>
    %60 = vector.shape_cast %59 : vector<8x8x8xbf16> to vector<64x8xbf16>
    %c5 = arith.constant 5 : index
    %c0_53 = arith.constant 0 : index
    %c0_54 = arith.constant 0 : index
    %61 = vector.load %arg2[%c5, %c0_53, %c0_54] : memref<9x8x8xbf16, #tpu.memory_space<vmem>>, vector<1x8x8xbf16>
    %62 = vector.shape_cast %61 : vector<1x8x8xbf16> to vector<8x8xbf16>
    %cst_55 = arith.constant dense<0.000000e+00> : vector<64x8xf32>
    %63 = tpu.matmul %60, %62, %cst_55 {dimension_numbers = #tpu.dot_dimension_numbers<[1], [0], [0], [1], [0, 0, 1, 1], [], []>} : vector<64x8xbf16>, vector<8x8xbf16>, vector<64x8xf32> -> vector<64x8xf32>
    %64 = arith.addf %56, %63 : vector<64x8xf32>
    %cst_56 = arith.constant 0.000000e+00 : bf16
    %65 = vector.broadcast %cst_56 : bf16 to vector<1x10x8xbf16>
    %cst_57 = arith.constant 0.000000e+00 : bf16
    %66 = vector.broadcast %cst_57 : bf16 to vector<10x1x8xbf16>
    %c0_58 = arith.constant 0 : index
    %c7_59 = arith.constant 7 : index
    %c0_60 = arith.constant 0 : index
    %67 = vector.load %arg5[%c0_58, %c7_59, %c0_60] : memref<10x17x8xbf16, #tpu.memory_space<vmem>>, vector<1x10x8xbf16>
    tpu.vector_store %arg5[%c0_58, %c7_59, %c0_60], %65 {strides = array<i32>} : memref<10x17x8xbf16, #tpu.memory_space<vmem>>, vector<1x10x8xbf16>,
    %c9 = arith.constant 9 : index
    %c7_61 = arith.constant 7 : index
    %c0_62 = arith.constant 0 : index
    %68 = vector.load %arg5[%c9, %c7_61, %c0_62] : memref<10x17x8xbf16, #tpu.memory_space<vmem>>, vector<1x10x8xbf16>
    tpu.vector_store %arg5[%c9, %c7_61, %c0_62], %65 {strides = array<i32>} : memref<10x17x8xbf16, #tpu.memory_space<vmem>>, vector<1x10x8xbf16>,
    %c0_63 = arith.constant 0 : index
    %c7_64 = arith.constant 7 : index
    %c0_65 = arith.constant 0 : index
    %69 = vector.load %arg5[%c0_63, %c7_64, %c0_65] : memref<10x17x8xbf16, #tpu.memory_space<vmem>>, vector<10x1x8xbf16>
    tpu.vector_store %arg5[%c0_63, %c7_64, %c0_65], %66 {strides = array<i32>} : memref<10x17x8xbf16, #tpu.memory_space<vmem>>, vector<10x1x8xbf16>,
    %c0_66 = arith.constant 0 : index
    %c16 = arith.constant 16 : index
    %c0_67 = arith.constant 0 : index
    %70 = vector.load %arg5[%c0_66, %c16, %c0_67] : memref<10x17x8xbf16, #tpu.memory_space<vmem>>, vector<10x1x8xbf16>
    tpu.vector_store %arg5[%c0_66, %c16, %c0_67], %66 {strides = array<i32>} : memref<10x17x8xbf16, #tpu.memory_space<vmem>>, vector<10x1x8xbf16>,
    %71 = vector.shape_cast %64 : vector<64x8xf32> to vector<8x8x8xf32>
    %72 = arith.truncf %71 : vector<8x8x8xf32> to vector<8x8x8xbf16>
    %c1_68 = arith.constant 1 : index
    %c8_69 = arith.constant 8 : index
    %c0_70 = arith.constant 0 : index
    %73 = vector.load %arg5[%c1_68, %c8_69, %c0_70] : memref<10x17x8xbf16, #tpu.memory_space<vmem>>, vector<8x8x8xbf16>
    tpu.vector_store %arg5[%c1_68, %c8_69, %c0_70], %72 {strides = array<i32>} : memref<10x17x8xbf16, #tpu.memory_space<vmem>>, vector<8x8x8xbf16>,
    %c0_71 = arith.constant 0 : index
    %c7_72 = arith.constant 7 : index
    %c0_73 = arith.constant 0 : index
    %74 = vector.load %arg5[%c0_71, %c7_72, %c0_73] : memref<10x17x8xbf16, #tpu.memory_space<vmem>>, vector<10x8x8xbf16>
    %75 = vector.extract_strided_slice %74 {offsets = [0, 0, 0], sizes = [8, 8, 8], strides = [1, 1, 1]} : vector<10x8x8xbf16> to vector<8x8x8xbf16>
    %76 = vector.shape_cast %75 : vector<8x8x8xbf16> to vector<64x8xbf16>
    %c0_74 = arith.constant 0 : index
    %c0_75 = arith.constant 0 : index
    %c0_76 = arith.constant 0 : index
    %77 = vector.load %arg3[%c0_74, %c0_75, %c0_76] : memref<9x8x8xbf16, #tpu.memory_space<vmem>>, vector<1x8x8xbf16>
    %78 = vector.shape_cast %77 : vector<1x8x8xbf16> to vector<8x8xbf16>
    %cst_77 = arith.constant dense<0.000000e+00> : vector<64x8xf32>
    %79 = tpu.matmul %76, %78, %cst_77 {dimension_numbers = #tpu.dot_dimension_numbers<[1], [0], [0], [1], [0, 0, 1, 1], [], []>} : vector<64x8xbf16>, vector<8x8xbf16>, vector<64x8xf32> -> vector<64x8xf32>
    %80 = vector.extract_strided_slice %74 {offsets = [1, 0, 0], sizes = [8, 8, 8], strides = [1, 1, 1]} : vector<10x8x8xbf16> to vector<8x8x8xbf16>
    %81 = vector.shape_cast %80 : vector<8x8x8xbf16> to vector<64x8xbf16>
    %c3_78 = arith.constant 3 : index
    %c0_79 = arith.constant 0 : index
    %c0_80 = arith.constant 0 : index
    %82 = vector.load %arg3[%c3_78, %c0_79, %c0_80] : memref<9x8x8xbf16, #tpu.memory_space<vmem>>, vector<1x8x8xbf16>
    %83 = vector.shape_cast %82 : vector<1x8x8xbf16> to vector<8x8xbf16>
    %cst_81 = arith.constant dense<0.000000e+00> : vector<64x8xf32>
    %84 = tpu.matmul %81, %83, %cst_81 {dimension_numbers = #tpu.dot_dimension_numbers<[1], [0], [0], [1], [0, 0, 1, 1], [], []>} : vector<64x8xbf16>, vector<8x8xbf16>, vector<64x8xf32> -> vector<64x8xf32>
    %85 = arith.addf %79, %84 : vector<64x8xf32>
    %86 = vector.extract_strided_slice %74 {offsets = [2, 0, 0], sizes = [8, 8, 8], strides = [1, 1, 1]} : vector<10x8x8xbf16> to vector<8x8x8xbf16>
    %87 = vector.shape_cast %86 : vector<8x8x8xbf16> to vector<64x8xbf16>
    %c6_82 = arith.constant 6 : index
    %c0_83 = arith.constant 0 : index
    %c0_84 = arith.constant 0 : index
    %88 = vector.load %arg3[%c6_82, %c0_83, %c0_84] : memref<9x8x8xbf16, #tpu.memory_space<vmem>>, vector<1x8x8xbf16>
    %89 = vector.shape_cast %88 : vector<1x8x8xbf16> to vector<8x8xbf16>
    %cst_85 = arith.constant dense<0.000000e+00> : vector<64x8xf32>
    %90 = tpu.matmul %87, %89, %cst_85 {dimension_numbers = #tpu.dot_dimension_numbers<[1], [0], [0], [1], [0, 0, 1, 1], [], []>} : vector<64x8xbf16>, vector<8x8xbf16>, vector<64x8xf32> -> vector<64x8xf32>
    %91 = arith.addf %85, %90 : vector<64x8xf32>
    %c0_86 = arith.constant 0 : index
    %c8_87 = arith.constant 8 : index
    %c0_88 = arith.constant 0 : index
    %92 = vector.load %arg5[%c0_86, %c8_87, %c0_88] : memref<10x17x8xbf16, #tpu.memory_space<vmem>>, vector<10x8x8xbf16>
    %93 = vector.extract_strided_slice %92 {offsets = [0, 0, 0], sizes = [8, 8, 8], strides = [1, 1, 1]} : vector<10x8x8xbf16> to vector<8x8x8xbf16>
    %94 = vector.shape_cast %93 : vector<8x8x8xbf16> to vector<64x8xbf16>
    %c1_89 = arith.constant 1 : index
    %c0_90 = arith.constant 0 : index
    %c0_91 = arith.constant 0 : index
    %95 = vector.load %arg3[%c1_89, %c0_90, %c0_91] : memref<9x8x8xbf16, #tpu.memory_space<vmem>>, vector<1x8x8xbf16>
    %96 = vector.shape_cast %95 : vector<1x8x8xbf16> to vector<8x8xbf16>
    %cst_92 = arith.constant dense<0.000000e+00> : vector<64x8xf32>
    %97 = tpu.matmul %94, %96, %cst_92 {dimension_numbers = #tpu.dot_dimension_numbers<[1], [0], [0], [1], [0, 0, 1, 1], [], []>} : vector<64x8xbf16>, vector<8x8xbf16>, vector<64x8xf32> -> vector<64x8xf32>
    %98 = arith.addf %91, %97 : vector<64x8xf32>
    %99 = vector.extract_strided_slice %92 {offsets = [1, 0, 0], sizes = [8, 8, 8], strides = [1, 1, 1]} : vector<10x8x8xbf16> to vector<8x8x8xbf16>
    %100 = vector.shape_cast %99 : vector<8x8x8xbf16> to vector<64x8xbf16>
    %c4_93 = arith.constant 4 : index
    %c0_94 = arith.constant 0 : index
    %c0_95 = arith.constant 0 : index
    %101 = vector.load %arg3[%c4_93, %c0_94, %c0_95] : memref<9x8x8xbf16, #tpu.memory_space<vmem>>, vector<1x8x8xbf16>
    %102 = vector.shape_cast %101 : vector<1x8x8xbf16> to vector<8x8xbf16>
    %cst_96 = arith.constant dense<0.000000e+00> : vector<64x8xf32>
    %103 = tpu.matmul %100, %102, %cst_96 {dimension_numbers = #tpu.dot_dimension_numbers<[1], [0], [0], [1], [0, 0, 1, 1], [], []>} : vector<64x8xbf16>, vector<8x8xbf16>, vector<64x8xf32> -> vector<64x8xf32>
    %104 = arith.addf %98, %103 : vector<64x8xf32>
    %105 = vector.extract_strided_slice %92 {offsets = [2, 0, 0], sizes = [8, 8, 8], strides = [1, 1, 1]} : vector<10x8x8xbf16> to vector<8x8x8xbf16>
    %106 = vector.shape_cast %105 : vector<8x8x8xbf16> to vector<64x8xbf16>
    %c7_97 = arith.constant 7 : index
    %c0_98 = arith.constant 0 : index
    %c0_99 = arith.constant 0 : index
    %107 = vector.load %arg3[%c7_97, %c0_98, %c0_99] : memref<9x8x8xbf16, #tpu.memory_space<vmem>>, vector<1x8x8xbf16>
    %108 = vector.shape_cast %107 : vector<1x8x8xbf16> to vector<8x8xbf16>
    %cst_100 = arith.constant dense<0.000000e+00> : vector<64x8xf32>
    %109 = tpu.matmul %106, %108, %cst_100 {dimension_numbers = #tpu.dot_dimension_numbers<[1], [0], [0], [1], [0, 0, 1, 1], [], []>} : vector<64x8xbf16>, vector<8x8xbf16>, vector<64x8xf32> -> vector<64x8xf32>
    %110 = arith.addf %104, %109 : vector<64x8xf32>
    %c0_101 = arith.constant 0 : index
    %c9_102 = arith.constant 9 : index
    %c0_103 = arith.constant 0 : index
    %111 = vector.load %arg5[%c0_101, %c9_102, %c0_103] : memref<10x17x8xbf16, #tpu.memory_space<vmem>>, vector<10x8x8xbf16>
    %112 = vector.extract_strided_slice %111 {offsets = [0, 0, 0], sizes = [8, 8, 8], strides = [1, 1, 1]} : vector<10x8x8xbf16> to vector<8x8x8xbf16>
    %113 = vector.shape_cast %112 : vector<8x8x8xbf16> to vector<64x8xbf16>
    %c2_104 = arith.constant 2 : index
    %c0_105 = arith.constant 0 : index
    %c0_106 = arith.constant 0 : index
    %114 = vector.load %arg3[%c2_104, %c0_105, %c0_106] : memref<9x8x8xbf16, #tpu.memory_space<vmem>>, vector<1x8x8xbf16>
    %115 = vector.shape_cast %114 : vector<1x8x8xbf16> to vector<8x8xbf16>
    %cst_107 = arith.constant dense<0.000000e+00> : vector<64x8xf32>
    %116 = tpu.matmul %113, %115, %cst_107 {dimension_numbers = #tpu.dot_dimension_numbers<[1], [0], [0], [1], [0, 0, 1, 1], [], []>} : vector<64x8xbf16>, vector<8x8xbf16>, vector<64x8xf32> -> vector<64x8xf32>
    %117 = arith.addf %110, %116 : vector<64x8xf32>
    %118 = vector.extract_strided_slice %111 {offsets = [1, 0, 0], sizes = [8, 8, 8], strides = [1, 1, 1]} : vector<10x8x8xbf16> to vector<8x8x8xbf16>
    %119 = vector.shape_cast %118 : vector<8x8x8xbf16> to vector<64x8xbf16>
    %c5_108 = arith.constant 5 : index
    %c0_109 = arith.constant 0 : index
    %c0_110 = arith.constant 0 : index
    %120 = vector.load %arg3[%c5_108, %c0_109, %c0_110] : memref<9x8x8xbf16, #tpu.memory_space<vmem>>, vector<1x8x8xbf16>
    %121 = vector.shape_cast %120 : vector<1x8x8xbf16> to vector<8x8xbf16>
    %cst_111 = arith.constant dense<0.000000e+00> : vector<64x8xf32>
    %122 = tpu.matmul %119, %121, %cst_111 {dimension_numbers = #tpu.dot_dimension_numbers<[1], [0], [0], [1], [0, 0, 1, 1], [], []>} : vector<64x8xbf16>, vector<8x8xbf16>, vector<64x8xf32> -> vector<64x8xf32>
    %123 = arith.addf %117, %122 : vector<64x8xf32>
    %124 = vector.extract_strided_slice %111 {offsets = [2, 0, 0], sizes = [8, 8, 8], strides = [1, 1, 1]} : vector<10x8x8xbf16> to vector<8x8x8xbf16>
    %125 = vector.shape_cast %124 : vector<8x8x8xbf16> to vector<64x8xbf16>
    %c8_112 = arith.constant 8 : index
    %c0_113 = arith.constant 0 : index
    %c0_114 = arith.constant 0 : index
    %126 = vector.load %arg3[%c8_112, %c0_113, %c0_114] : memref<9x8x8xbf16, #tpu.memory_space<vmem>>, vector<1x8x8xbf16>
    %127 = vector.shape_cast %126 : vector<1x8x8xbf16> to vector<8x8xbf16>
    %cst_115 = arith.constant dense<0.000000e+00> : vector<64x8xf32>
    %128 = tpu.matmul %125, %127, %cst_115 {dimension_numbers = #tpu.dot_dimension_numbers<[1], [0], [0], [1], [0, 0, 1, 1], [], []>} : vector<64x8xbf16>, vector<8x8xbf16>, vector<64x8xf32> -> vector<64x8xf32>
    %129 = arith.addf %123, %128 : vector<64x8xf32>
    %cst_116 = arith.constant dense<0.000000e+00> : vector<8xf32>
    %130 = vector.multi_reduction <add>, %129, %cst_116 [0] : vector<64x8xf32> to vector<8xf32>
    %131 = vector.shape_cast %130 : vector<8xf32> to vector<1x8xf32>
    %cst_117 = arith.constant 1.562500e-02 : f32
    %132 = vector.broadcast %cst_117 : f32 to vector<1x8xf32>
    %133 = arith.mulf %131, %132 : vector<1x8xf32>
    %134 = vector.broadcast %133 : vector<1x8xf32> to vector<64x8xf32>
    %135 = arith.subf %129, %134 : vector<64x8xf32>
    %136 = arith.mulf %135, %135 : vector<64x8xf32>
    %cst_118 = arith.constant dense<0.000000e+00> : vector<8xf32>
    %137 = vector.multi_reduction <add>, %136, %cst_118 [0] : vector<64x8xf32> to vector<8xf32>
    %138 = vector.shape_cast %137 : vector<8xf32> to vector<1x8xf32>
    %cst_119 = arith.constant 1.562500e-02 : f32
    %139 = vector.broadcast %cst_119 : f32 to vector<1x8xf32>
    %140 = arith.mulf %138, %139 : vector<1x8xf32>
    %cst_120 = arith.constant 9.99999974E-6 : f32
    %141 = vector.broadcast %cst_120 : f32 to vector<1x8xf32>
    %142 = arith.addf %140, %141 : vector<1x8xf32>
    %143 = math.rsqrt %142 : vector<1x8xf32>
    %144 = vector.broadcast %143 : vector<1x8xf32> to vector<64x8xf32>
    %145 = arith.mulf %135, %144 : vector<64x8xf32>
    %cst_121 = arith.constant 0.000000e+00 : f32
    %146 = vector.broadcast %cst_121 : f32 to vector<64x8xf32>
    %147 = arith.cmpf ogt, %145, %146 : vector<64x8xf32>
    %cst_122 = arith.constant 0.00999999977 : f32
    %148 = vector.broadcast %cst_122 : f32 to vector<64x8xf32>
    %149 = arith.mulf %148, %145 : vector<64x8xf32>
    %150 = arith.select %147, %145, %149 : vector<64x8xi1>, vector<64x8xf32>
    %151 = tpu.transpose %150, [1, 0] : vector<64x8xf32> -> vector<8x64xf32>
    %c0_123 = arith.constant 0 : index
    %c0_124 = arith.constant 0 : index
    %c0_125 = arith.constant 0 : index
    %152 = vector.load %arg4[%c0_123, %c0_124, %c0_125] : memref<1x8x64xf32, #tpu.memory_space<vmem>>, vector<1x8x64xf32>
    %153 = vector.shape_cast %152 : vector<1x8x64xf32> to vector<8x64xf32>
    %154 = vector.shape_cast %151 : vector<8x64xf32> to vector<1x8x64xf32>
    tpu.vector_store %arg4[%c0_123, %c0_124, %c0_125], %154 {strides = array<i32>} : memref<1x8x64xf32, #tpu.memory_space<vmem>>, vector<1x8x64xf32>,
    return
  }
  func.func @transform_0(%arg0: i32) -> (i32, i32, i32, i32, i32) {
    %c0_i32 = arith.constant 0 : i32
    %c0_i32_0 = arith.constant 0 : i32
    %c0_i32_1 = arith.constant 0 : i32
    %c0_i32_2 = arith.constant 0 : i32
    %c0_i32_3 = arith.constant 0 : i32
    return %arg0, %c0_i32, %c0_i32_0, %c0_i32_1, %c0_i32_2 : i32, i32, i32, i32, i32
  }
  func.func @transform_1(%arg0: i32) -> (i32, i32, i32) {
    %c0_i32 = arith.constant 0 : i32
    %c0_i32_0 = arith.constant 0 : i32
    %c0_i32_1 = arith.constant 0 : i32
    %c0_i32_2 = arith.constant 0 : i32
    return %c0_i32, %c0_i32_0, %c0_i32_1 : i32, i32, i32
  }
  func.func @transform_2(%arg0: i32) -> (i32, i32, i32) {
    %c0_i32 = arith.constant 0 : i32
    %c0_i32_0 = arith.constant 0 : i32
    %c0_i32_1 = arith.constant 0 : i32
    %c0_i32_2 = arith.constant 0 : i32
    return %c0_i32, %c0_i32_0, %c0_i32_1 : i32, i32, i32
  }
  func.func @transform_3(%arg0: i32) -> (i32, i32, i32) {
    %c0_i32 = arith.constant 0 : i32
    %c0_i32_0 = arith.constant 0 : i32
    %c0_i32_1 = arith.constant 0 : i32
    return %arg0, %c0_i32, %c0_i32_0 : i32, i32, i32
  }
}

</mosaic_0001>

<llo_original>
// kernel: downsample2d_pallas.1
$region0: #{downsample2d_pallas.1}
  #allocation0 [shape = 'u32[]', space=smem, size = 0x4, offset = 0x4, fixed_abs, tag = 'smem constant byte address 0x4 - core index']
  #allocation1 [shape = 'u32[72,128]{1,0:T(1,128)}', space=vmem, size = 0x9000, scoped, tag = 'internal scratch']
  #allocation2 [shape = 'bf16[10,17,8]{2,1,0:T(8,128)(2,1)}', space=vmem, size = 0xf000, scoped, tag = 'scratch operand']
  %s0 = inlined_call_operand.vmem [shape: bf16[2,4,9,9,8], index: 0, kind: input, shape index: {}]
  %s1 = inlined_call_operand.vmem [shape: bf16[9,8,8], index: 1, kind: input, shape index: {}]
  %s2 = inlined_call_operand.vmem [shape: bf16[9,8,8], index: 2, kind: input, shape index: {}]
  %s3 = inlined_call_operand.vmem [shape: f32[2,8,64], index: 3, kind: output, shape index: {}]
  %s4 = sld [smem:[#allocation0]]
  $region45: #{downsample2d_pallas.1} parent=0
    _
  %s6 = ssub.s32 1, %s4
  %s7 = scalar_select 0, %s6, %s4
  loop: start=0, step=1, limit=4
  $region2: #{downsample2d_pallas.1} parent=0 // loop_pre_header
    _
  $region3: #{downsample2d_pallas.1} parent=0 // loop_header
    %s9 = sphi 0, %s13
    %p10 = scmp.ge.s32.totalorder %s9, 4
    %s19 = sphi 0, %s21
    %s22 = sphi 0, %s19
    %s23 = sphi 0, %s22
    %s39 = sphi 0, %s23
    %s43 = sphi 0, %s43
    %s45 = sphi 0, %s43
    %s46 = sphi 0, %s45
    %s60 = sphi 0, %s46
    %s64 = sphi 0, %s64
    %s66 = sphi 0, %s64
    %s67 = sphi 0, %s66
    %s81 = sphi 0, %s67
    %s87 = sphi 0, %s89
    %s90 = sphi 0, %s87
    %s91 = sphi 0, %s90
    %s107 = sphi 0, %s91
  $region4: #{downsample2d_pallas.1} parent=0 // loop_header_branch
    %12 = sbr.rel (%p10) target = $region8
  $region5: #{downsample2d_pallas.1} parent=0 // loop_body
    %s14 = ssub.s32 %s9, 1
    %s15 = ssub.s32 %s9, 2
    %s16 = sadd.s32 %s9, 1
    %s17 = ssub.s32 %s9, %s16
    %p18 = scmp.eq.s32.totalorder %s17, 0
    %s20 = sadd.s32 %s19, 1
    %s21 = scalar_select %p18, %s19, %s20
    %p24 = pneg %p18
    %p25 = scmp.eq.s32.totalorder %s9, 1
    %p26 = por %p24, %p25
    %p27 = scmp.ne.s32.totalorder %s19, %s22
    %p28 = scmp.eq.s32.totalorder %s9, 0
    %p29 = por %p27, %p28
    %p30 = scmp.ne.s32.totalorder %s19, %s22
    %p31 = scmp.eq.s32.totalorder %s14, 1
    %p32 = por %p30, %p31
    %p33 = scmp.ne.s32.totalorder %s22, %s23
    %p34 = scmp.eq.s32.totalorder %s14, 0
    %p35 = por %p33, %p34
    %p36 = scmp.ne.s32.totalorder %s22, %s23
    %p37 = scmp.eq.s32.totalorder %s15, 1
    %p38 = por %p36, %p37
    %p40 = scmp.ne.s32.totalorder %s23, %s39
    %p41 = scmp.eq.s32.totalorder %s15, 0
    %p42 = por %p40, %p41
    %s44 = sadd.s32 %s43, 1
    %p47 = scmp.eq.s32.totalorder %s9, 1
    %p48 = scmp.ne.s32.totalorder %s43, %s45
    %p49 = scmp.eq.s32.totalorder %s9, 0
    %p50 = por %p48, %p49
    %p51 = scmp.ne.s32.totalorder %s43, %s45
    %p52 = scmp.eq.s32.totalorder %s14, 1
    %p53 = por %p51, %p52
    %p54 = scmp.ne.s32.totalorder %s45, %s46
    %p55 = scmp.eq.s32.totalorder %s14, 0
    %p56 = por %p54, %p55
    %p57 = scmp.ne.s32.totalorder %s45, %s46
    %p58 = scmp.eq.s32.totalorder %s15, 1
    %p59 = por %p57, %p58
    %p61 = scmp.ne.s32.totalorder %s46, %s60
    %p62 = scmp.eq.s32.totalorder %s15, 0
    %p63 = por %p61, %p62
    %s65 = sadd.s32 %s64, 1
    %p68 = scmp.eq.s32.totalorder %s9, 1
    %p69 = scmp.ne.s32.totalorder %s64, %s66
    %p70 = scmp.eq.s32.totalorder %s9, 0
    %p71 = por %p69, %p70
    %p72 = scmp.ne.s32.totalorder %s64, %s66
    %p73 = scmp.eq.s32.totalorder %s14, 1
    %p74 = por %p72, %p73
    %p75 = scmp.ne.s32.totalorder %s66, %s67
    %p76 = scmp.eq.s32.totalorder %s14, 0
    %p77 = por %p75, %p76
    %p78 = scmp.ne.s32.totalorder %s66, %s67
    %p79 = scmp.eq.s32.totalorder %s15, 1
    %p80 = por %p78, %p79
    %p82 = scmp.ne.s32.totalorder %s67, %s81
    %p83 = scmp.eq.s32.totalorder %s15, 0
    %p84 = por %p82, %p83
    %s85 = ssub.s32 %s9, %s16
    %p86 = scmp.eq.s32.totalorder %s85, 0
    %s88 = sadd.s32 %s87, 1
    %s89 = scalar_select %p86, %s87, %s88
    %p92 = pneg %p86
    %p93 = scmp.eq.s32.totalorder %s9, 1
    %p94 = por %p92, %p93
    %p95 = scmp.ne.s32.totalorder %s87, %s90
    %p96 = scmp.eq.s32.totalorder %s9, 0
    %p97 = por %p95, %p96
    %p98 = scmp.ne.s32.totalorder %s87, %s90
    %p99 = scmp.eq.s32.totalorder %s14, 1
    %p100 = por %p98, %p99
    %p101 = scmp.ne.s32.totalorder %s90, %s91
    %p102 = scmp.eq.s32.totalorder %s14, 0
    %p103 = por %p101, %p102
    %p104 = scmp.ne.s32.totalorder %s90, %s91
    %p105 = scmp.eq.s32.totalorder %s15, 1
    %p106 = por %p104, %p105
    %p108 = scmp.ne.s32.totalorder %s91, %s107
    %p109 = scmp.eq.s32.totalorder %s15, 0
    %p110 = por %p108, %p109
    %p111 = scmp.le.s32.totalorder 1, %s9
    %p112 = scmp.lt.s32.totalorder %s9, 3
    %p113 = pnand %p111, %p112
    %p114 = pneg %p113
    // Predicated region
    $region9: #{downsample2d_pallas.1} parent=5 // pred_check
      _
    $region10: #{downsample2d_pallas.1} parent=5 // pred_check_branch
      %116 = sbr.rel (%p113) target = $region12
    $region11: #{downsample2d_pallas.1} parent=5 // pred_region
      %s117 = ssub.s32 %s9, 1
      // Predicated region
      $region13: #{downsample2d_pallas.1} parent=11 // pred_check
        %p118 = pneg %p56
      $region14: #{downsample2d_pallas.1} parent=11 // pred_check_branch
        %120 = sbr.rel (%p118) target = $region16
      $region15: #{downsample2d_pallas.1} parent=11 // pred_region
        _
      $region16: #{downsample2d_pallas.1} parent=11 // pred_fallthru
        _
      // Predicated region
      $region17: #{downsample2d_pallas.1} parent=11 // pred_check
        %p121 = pneg %p77
      $region18: #{downsample2d_pallas.1} parent=11 // pred_check_branch
        %123 = sbr.rel (%p121) target = $region20
      $region19: #{downsample2d_pallas.1} parent=11 // pred_region
        _
      $region20: #{downsample2d_pallas.1} parent=11 // pred_fallthru
        _
    $region12: #{downsample2d_pallas.1} parent=5 // pred_fallthru
      _
    %p124 = scmp.lt.s32.totalorder %s9, 2
    // Predicated region
    $region21: #{downsample2d_pallas.1} parent=5 // pred_check
      %p125 = pneg %p124
    $region22: #{downsample2d_pallas.1} parent=5 // pred_check_branch
      %127 = sbr.rel (%p125) target = $region24
    $region23: #{downsample2d_pallas.1} parent=5 // pred_region
      // Predicated region
      $region25: #{downsample2d_pallas.1} parent=23 // pred_check
        %p128 = pneg %p29
      $region26: #{downsample2d_pallas.1} parent=23 // pred_check_branch
        %130 = sbr.rel (%p128) target = $region28
      $region27: #{downsample2d_pallas.1} parent=23 // pred_region
        %p131 = scmp.lt.s32.totalorder %s9, 1
        %s132 = scalar_select %p131, %s9, 1
        %s133 = smul.addr %s132, 72
        %s134 = smul.addr %s133, 4
        %s135 = scalar_lea.vmem %s0, %s134
      $region28: #{downsample2d_pallas.1} parent=23 // pred_fallthru
        _
    $region24: #{downsample2d_pallas.1} parent=5 // pred_fallthru
      _
    %p136 = scmp.le.s32.totalorder 1, %s9
    %p137 = scmp.lt.s32.totalorder %s9, 3
    %p138 = pnand %p136, %p137
    %p139 = pneg %p138
    // Predicated region
    $region29: #{downsample2d_pallas.1} parent=5 // pred_check
      _
    $region30: #{downsample2d_pallas.1} parent=5 // pred_check_branch
      %141 = sbr.rel (%p138) target = $region32
    $region31: #{downsample2d_pallas.1} parent=5 // pred_region
      %s142 = ssub.s32 %s9, 1
      %p143 = scmp.lt.s32.totalorder %s14, 1
      %s144 = scalar_select %p143, %s14, 1
      %s145 = smul.addr %s144, 72
      %s146 = smul.addr %s145, 4
      %s147 = scalar_lea.vmem %s0, %s146
      %p148 = pneg %p35
      %p149 = pneg %p32
      %p150 = pneg %p56
      %p151 = pneg %p53
      %p152 = pneg %p77
      %p153 = pneg %p74
      %p154 = pneg %p103
      %p155 = pneg %p100
      %p156 = scmp.lt.s32.totalorder %s14, 1
      %s157 = scalar_select %p156, %s14, 1
      %s158 = smul.addr %s157, 8
      %s159 = scalar_lea.vmem %s3, %s158
      %p160 = scmp.lt.s32.totalorder %s14, 1
      %s161 = scalar_select %p160, %s14, 1
      %s162 = smul.addr %s161, 72
      %s163 = smul.addr %s162, 4
      %s164 = scalar_lea.vmem %s0, %s163
      %p165 = scmp.lt.s32.totalorder %s14, 1
      %s166 = scalar_select %p165, %s14, 1
      %s167 = smul.addr %s166, 8
      %s168 = scalar_lea.vmem %s3, %s167
      %v170 = vld [vmem:[%s164] sm:$0xf]
      %v171 = vld [vmem:[%s164 + $0x8] sm:$0xf]
      %v172 = vld [vmem:[%s164 + $0x10] sm:$0xf]
      %v173 = vld [vmem:[%s164 + $0x18] sm:$0xf]
      %v174 = vld [vmem:[%s164 + $0x20] sm:$0xf]
      %v175 = vld [vmem:[%s164 + $0x28] sm:$0xf]
      %v176 = vld [vmem:[%s164 + $0x30] sm:$0xf]
      %v177 = vld [vmem:[%s164 + $0x38] sm:$0xf]
      %v178 = vld [vmem:[%s164 + $0x40] sm:$0xf]
      %v179 = vld [vmem:[%s1] sm:$0xf]
      %s180 = scalar_lea.vmem %s1, 24
      %v181 = vld [vmem:[%s180] sm:$0xf]
      %v190 = vunpack.c.l.b16 %v171
      %v191 = vunpack.c.l.b16 %v172
      %v192 = vunpack.c.l.b16 %v173
      %v193 = vunpack.c.l.b16 %v174
      %v194 = vunpack.c.l.b16 %v175
      %v195 = vunpack.c.l.b16 %v176
      %v196 = vunpack.c.l.b16 %v177
      %v197 = vunpack.c.l.b16 %v178
      %v198 = vpack.c.b16 %v191, %v190
      %v199 = vpack.c.b16 %v193, %v192
      %v200 = vpack.c.b16 %v195, %v194
      %v201 = vpack.c.b16 %v197, %v196
      %vm202 = vcmask 64512
      %v204 = vsel %vm202, %v198, 0
      %v207 = vsel %vm202, %v199, 0
      %v210 = vsel %vm202, %v200, 0
      %v213 = vsel %vm202, %v201, 0
      %vm215 = vcmask 1043456
      %v217 = vsel %vm215, %v181, 0
      %219 = vmatpush.bf16.msra.mxu0 0
      %220 = vmatpush.bf16.msra.mxu0 0
      %221 = vmatpush.bf16.msra.mxu0 0
      %222 = vmatpush.bf16.msra.mxu0 0
      %223 = vmatpush.bf16.msra.mxu0 0
      %224 = vmatpush.bf16.msra.mxu0 0
      %225 = vmatpush.bf16.msra.mxu0 0
      %226 = vmatpush.bf16.msra.mxu0 %v217
      %227 = vmatmul.bf16.gmra.mxu0 %v204
      %v228 = vpop.f32.mrf.mxu0
      %v229 = vadd.f32 0.0, %v228
      %v230 = vpop.f32.mrf.mxu0
      %v231 = vadd.f32 0.0, %v230
      %232 = vmatmul.bf16.gmra.mxu0 %v207
      %v233 = vpop.f32.mrf.mxu0
      %v234 = vadd.f32 0.0, %v233
      %v235 = vpop.f32.mrf.mxu0
      %v236 = vadd.f32 0.0, %v235
      %237 = vmatmul.bf16.gmra.mxu0 %v210
      %v238 = vpop.f32.mrf.mxu0
      %v239 = vadd.f32 0.0, %v238
      %v240 = vpop.f32.mrf.mxu0
      %v241 = vadd.f32 0.0, %v240
      %242 = vmatmul.bf16.gmra.mxu0 %v213
      %v243 = vpop.f32.mrf.mxu0
      %v244 = vadd.f32 0.0, %v243
      %v245 = vpop.f32.mrf.mxu0
      %v246 = vadd.f32 0.0, %v245
      %247 = vdwg.mxu0
      %v249 = vunpack.c.l.b16 %v170
      %v250 = vpack.c.b16 %v190, %v249
      %v251 = vpack.c.b16 %v192, %v191
      %v252 = vpack.c.b16 %v194, %v193
      %v253 = vpack.c.b16 %v196, %v195
      %v255 = vsel %vm202, %v250, 0
      %v258 = vsel %vm202, %v251, 0
      %v261 = vsel %vm202, %v252, 0
      %v264 = vsel %vm202, %v253, 0
      %v267 = vsel %vm215, %v179, 0
      %269 = vmatpush.bf16.msra.mxu0 0
      %270 = vmatpush.bf16.msra.mxu0 0
      %271 = vmatpush.bf16.msra.mxu0 0
      %272 = vmatpush.bf16.msra.mxu0 0
      %273 = vmatpush.bf16.msra.mxu0 0
      %274 = vmatpush.bf16.msra.mxu0 0
      %275 = vmatpush.bf16.msra.mxu0 0
      %276 = vmatpush.bf16.msra.mxu0 %v267
      %277 = vmatmul.bf16.gmra.mxu0 %v255
      %v278 = vpop.f32.mrf.mxu0
      %v279 = vadd.f32 %v229, %v278
      %v280 = vpop.f32.mrf.mxu0
      %v281 = vadd.f32 %v231, %v280
      %282 = vmatmul.bf16.gmra.mxu0 %v258
      %v283 = vpop.f32.mrf.mxu0
      %v284 = vadd.f32 %v234, %v283
      %v285 = vpop.f32.mrf.mxu0
      %v286 = vadd.f32 %v236, %v285
      %287 = vmatmul.bf16.gmra.mxu0 %v261
      %v288 = vpop.f32.mrf.mxu0
      %v289 = vadd.f32 %v239, %v288
      %v290 = vpop.f32.mrf.mxu0
      %v291 = vadd.f32 %v241, %v290
      %292 = vmatmul.bf16.gmra.mxu0 %v264
      %v293 = vpop.f32.mrf.mxu0
      %v294 = vadd.f32 %v244, %v293
      %v295 = vpop.f32.mrf.mxu0
      %v296 = vadd.f32 %v246, %v295
      %297 = vdwg.mxu0
      %s298 = scalar_lea.vmem %s164, 144
      %v299 = vld [vmem:[%s298] sm:$0xf]
      %v300 = vld [vmem:[%s298 + $0x8] sm:$0xf]
      %v301 = vld [vmem:[%s298 + $0x10] sm:$0xf]
      %v302 = vld [vmem:[%s298 + $0x18] sm:$0xf]
      %v303 = vld [vmem:[%s298 + $0x20] sm:$0xf]
      %v304 = vld [vmem:[%s298 + $0x28] sm:$0xf]
      %v305 = vld [vmem:[%s298 + $0x30] sm:$0xf]
      %v306 = vld [vmem:[%s298 + $0x38] sm:$0xf]
      %s307 = scalar_lea.vmem %s1, 12
      %v308 = vld [vmem:[%s307] sm:$0xf]
      %v317 = vunpack.c.l.b16 %v299
      %v318 = vunpack.c.l.b16 %v300
      %v319 = vunpack.c.l.b16 %v301
      %v320 = vunpack.c.l.b16 %v302
      %v321 = vunpack.c.l.b16 %v303
      %v322 = vunpack.c.l.b16 %v304
      %v323 = vunpack.c.l.b16 %v305
      %v324 = vunpack.c.l.b16 %v306
      %v325 = vpack.c.b16 %v318, %v317
      %v326 = vpack.c.b16 %v320, %v319
      %v327 = vpack.c.b16 %v322, %v321
      %v328 = vpack.c.b16 %v324, %v323
      %v330 = vsel %vm202, %v325, 0
      %v333 = vsel %vm202, %v326, 0
      %v336 = vsel %vm202, %v327, 0
      %v339 = vsel %vm202, %v328, 0
      %v342 = vsel %vm215, %v308, 0
      %344 = vmatpush.bf16.msra.mxu0 0
      %345 = vmatpush.bf16.msra.mxu0 0
      %346 = vmatpush.bf16.msra.mxu0 0
      %347 = vmatpush.bf16.msra.mxu0 0
      %348 = vmatpush.bf16.msra.mxu0 0
      %349 = vmatpush.bf16.msra.mxu0 0
      %350 = vmatpush.bf16.msra.mxu0 0
      %351 = vmatpush.bf16.msra.mxu0 %v342
      %352 = vmatmul.bf16.gmra.mxu0 %v330
      %v353 = vpop.f32.mrf.mxu0
      %v354 = vadd.f32 0.0, %v353
      %v355 = vpop.f32.mrf.mxu0
      %v356 = vadd.f32 0.0, %v355
      %357 = vmatmul.bf16.gmra.mxu0 %v333
      %v358 = vpop.f32.mrf.mxu0
      %v359 = vadd.f32 0.0, %v358
      %v360 = vpop.f32.mrf.mxu0
      %v361 = vadd.f32 0.0, %v360
      %362 = vmatmul.bf16.gmra.mxu0 %v336
      %v363 = vpop.f32.mrf.mxu0
      %v364 = vadd.f32 0.0, %v363
      %v365 = vpop.f32.mrf.mxu0
      %v366 = vadd.f32 0.0, %v365
      %367 = vmatmul.bf16.gmra.mxu0 %v339
      %v368 = vpop.f32.mrf.mxu0
      %v369 = vadd.f32 0.0, %v368
      %v370 = vpop.f32.mrf.mxu0
      %v371 = vadd.f32 0.0, %v370
      %372 = vdwg.mxu0
      %v373 = vadd.f32 %v279, %v354
      %v374 = vadd.f32 %v281, %v356
      %v375 = vadd.f32 %v284, %v359
      %v376 = vadd.f32 %v286, %v361
      %v377 = vadd.f32 %v289, %v364
      %v378 = vadd.f32 %v291, %v366
      %v379 = vadd.f32 %v294, %v369
      %v380 = vadd.f32 %v296, %v371
      %s381 = scalar_lea.vmem %s164, 72
      %v382 = vld [vmem:[%s381] sm:$0xf]
      %v383 = vld [vmem:[%s381 + $0x8] sm:$0xf]
      %v384 = vld [vmem:[%s381 + $0x10] sm:$0xf]
      %v385 = vld [vmem:[%s381 + $0x18] sm:$0xf]
      %v386 = vld [vmem:[%s381 + $0x20] sm:$0xf]
      %v387 = vld [vmem:[%s381 + $0x28] sm:$0xf]
      %v388 = vld [vmem:[%s381 + $0x30] sm:$0xf]
      %v389 = vld [vmem:[%s381 + $0x38] sm:$0xf]
      %v390 = vld [vmem:[%s381 + $0x40] sm:$0xf]
      %s391 = scalar_lea.vmem %s1, 4
      %v392 = vld [vmem:[%s391] sm:$0xf]
      %v401 = vunpack.c.l.b16 %v382
      %v402 = vunpack.c.l.b16 %v383
      %v403 = vunpack.c.l.b16 %v384
      %v404 = vunpack.c.l.b16 %v385
      %v405 = vunpack.c.l.b16 %v386
      %v406 = vunpack.c.l.b16 %v387
      %v407 = vunpack.c.l.b16 %v388
      %v408 = vunpack.c.l.b16 %v389
      %v409 = vpack.c.b16 %v402, %v401
      %v410 = vpack.c.b16 %v404, %v403
      %v411 = vpack.c.b16 %v406, %v405
      %v412 = vpack.c.b16 %v408, %v407
      %v414 = vsel %vm202, %v409, 0
      %v417 = vsel %vm202, %v410, 0
      %v420 = vsel %vm202, %v411, 0
      %v423 = vsel %vm202, %v412, 0
      %v426 = vsel %vm215, %v392, 0
      %428 = vmatpush.bf16.msra.mxu0 0
      %429 = vmatpush.bf16.msra.mxu0 0
      %430 = vmatpush.bf16.msra.mxu0 0
      %431 = vmatpush.bf16.msra.mxu0 0
      %432 = vmatpush.bf16.msra.mxu0 0
      %433 = vmatpush.bf16.msra.mxu0 0
      %434 = vmatpush.bf16.msra.mxu0 0
      %435 = vmatpush.bf16.msra.mxu0 %v426
      %436 = vmatmul.bf16.gmra.mxu0 %v414
      %v437 = vpop.f32.mrf.mxu0
      %v438 = vadd.f32 0.0, %v437
      %v439 = vpop.f32.mrf.mxu0
      %v440 = vadd.f32 0.0, %v439
      %441 = vmatmul.bf16.gmra.mxu0 %v417
      %v442 = vpop.f32.mrf.mxu0
      %v443 = vadd.f32 0.0, %v442
      %v444 = vpop.f32.mrf.mxu0
      %v445 = vadd.f32 0.0, %v444
      %446 = vmatmul.bf16.gmra.mxu0 %v420
      %v447 = vpop.f32.mrf.mxu0
      %v448 = vadd.f32 0.0, %v447
      %v449 = vpop.f32.mrf.mxu0
      %v450 = vadd.f32 0.0, %v449
      %451 = vmatmul.bf16.gmra.mxu0 %v423
      %v452 = vpop.f32.mrf.mxu0
      %v453 = vadd.f32 0.0, %v452
      %v454 = vpop.f32.mrf.mxu0
      %v455 = vadd.f32 0.0, %v454
      %456 = vdwg.mxu0
      %v457 = vadd.f32 %v373, %v438
      %v458 = vadd.f32 %v374, %v440
      %v459 = vadd.f32 %v375, %v443
      %v460 = vadd.f32 %v376, %v445
      %v461 = vadd.f32 %v377, %v448
      %v462 = vadd.f32 %v378, %v450
      %v463 = vadd.f32 %v379, %v453
      %v464 = vadd.f32 %v380, %v455
      %s465 = scalar_lea.vmem %s1, 28
      %v466 = vld [vmem:[%s465] sm:$0xf]
      %v468 = vunpack.c.l.b16 %v390
      %v469 = vpack.c.b16 %v403, %v402
      %v470 = vpack.c.b16 %v405, %v404
      %v471 = vpack.c.b16 %v407, %v406
      %v472 = vpack.c.b16 %v468, %v408
      %v474 = vsel %vm202, %v469, 0
      %v477 = vsel %vm202, %v470, 0
      %v480 = vsel %vm202, %v471, 0
      %v483 = vsel %vm202, %v472, 0
      %v486 = vsel %vm215, %v466, 0
      %488 = vmatpush.bf16.msra.mxu0 0
      %489 = vmatpush.bf16.msra.mxu0 0
      %490 = vmatpush.bf16.msra.mxu0 0
      %491 = vmatpush.bf16.msra.mxu0 0
      %492 = vmatpush.bf16.msra.mxu0 0
      %493 = vmatpush.bf16.msra.mxu0 0
      %494 = vmatpush.bf16.msra.mxu0 0
      %495 = vmatpush.bf16.msra.mxu0 %v486
      %496 = vmatmul.bf16.gmra.mxu0 %v474
      %v497 = vpop.f32.mrf.mxu0
      %v498 = vadd.f32 0.0, %v497
      %v499 = vpop.f32.mrf.mxu0
      %v500 = vadd.f32 0.0, %v499
      %501 = vmatmul.bf16.gmra.mxu0 %v477
      %v502 = vpop.f32.mrf.mxu0
      %v503 = vadd.f32 0.0, %v502
      %v504 = vpop.f32.mrf.mxu0
      %v505 = vadd.f32 0.0, %v504
      %506 = vmatmul.bf16.gmra.mxu0 %v480
      %v507 = vpop.f32.mrf.mxu0
      %v508 = vadd.f32 0.0, %v507
      %v509 = vpop.f32.mrf.mxu0
      %v510 = vadd.f32 0.0, %v509
      %511 = vmatmul.bf16.gmra.mxu0 %v483
      %v512 = vpop.f32.mrf.mxu0
      %v513 = vadd.f32 0.0, %v512
      %v514 = vpop.f32.mrf.mxu0
      %v515 = vadd.f32 0.0, %v514
      %516 = vdwg.mxu0
      %v517 = vadd.f32 %v457, %v498
      %v518 = vadd.f32 %v458, %v500
      %v519 = vadd.f32 %v459, %v503
      %v520 = vadd.f32 %v460, %v505
      %v521 = vadd.f32 %v461, %v508
      %v522 = vadd.f32 %v462, %v510
      %v523 = vadd.f32 %v463, %v513
      %v524 = vadd.f32 %v464, %v515
      %s525 = scalar_lea.vmem %s164, 216
      %v526 = vld [vmem:[%s525] sm:$0xf]
      %v527 = vld [vmem:[%s525 + $0x8] sm:$0xf]
      %v528 = vld [vmem:[%s525 + $0x10] sm:$0xf]
      %v529 = vld [vmem:[%s525 + $0x18] sm:$0xf]
      %v530 = vld [vmem:[%s525 + $0x20] sm:$0xf]
      %v531 = vld [vmem:[%s525 + $0x28] sm:$0xf]
      %v532 = vld [vmem:[%s525 + $0x30] sm:$0xf]
      %v533 = vld [vmem:[%s525 + $0x38] sm:$0xf]
      %s534 = scalar_lea.vmem %s1, 16
      %v535 = vld [vmem:[%s534] sm:$0xf]
      %v544 = vunpack.c.l.b16 %v526
      %v545 = vunpack.c.l.b16 %v527
      %v546 = vunpack.c.l.b16 %v528
      %v547 = vunpack.c.l.b16 %v529
      %v548 = vunpack.c.l.b16 %v530
      %v549 = vunpack.c.l.b16 %v531
      %v550 = vunpack.c.l.b16 %v532
      %v551 = vunpack.c.l.b16 %v533
      %v552 = vpack.c.b16 %v545, %v544
      %v553 = vpack.c.b16 %v547, %v546
      %v554 = vpack.c.b16 %v549, %v548
      %v555 = vpack.c.b16 %v551, %v550
      %v557 = vsel %vm202, %v552, 0
      %v560 = vsel %vm202, %v553, 0
      %v563 = vsel %vm202, %v554, 0
      %v566 = vsel %vm202, %v555, 0
      %v569 = vsel %vm215, %v535, 0
      %571 = vmatpush.bf16.msra.mxu0 0
      %572 = vmatpush.bf16.msra.mxu0 0
      %573 = vmatpush.bf16.msra.mxu0 0
      %574 = vmatpush.bf16.msra.mxu0 0
      %575 = vmatpush.bf16.msra.mxu0 0
      %576 = vmatpush.bf16.msra.mxu0 0
      %577 = vmatpush.bf16.msra.mxu0 0
      %578 = vmatpush.bf16.msra.mxu0 %v569
      %579 = vmatmul.bf16.gmra.mxu0 %v557
      %v580 = vpop.f32.mrf.mxu0
      %v581 = vadd.f32 0.0, %v580
      %v582 = vpop.f32.mrf.mxu0
      %v583 = vadd.f32 0.0, %v582
      %584 = vmatmul.bf16.gmra.mxu0 %v560
      %v585 = vpop.f32.mrf.mxu0
      %v586 = vadd.f32 0.0, %v585
      %v587 = vpop.f32.mrf.mxu0
      %v588 = vadd.f32 0.0, %v587
      %589 = vmatmul.bf16.gmra.mxu0 %v563
      %v590 = vpop.f32.mrf.mxu0
      %v591 = vadd.f32 0.0, %v590
      %v592 = vpop.f32.mrf.mxu0
      %v593 = vadd.f32 0.0, %v592
      %594 = vmatmul.bf16.gmra.mxu0 %v566
      %v595 = vpop.f32.mrf.mxu0
      %v596 = vadd.f32 0.0, %v595
      %v597 = vpop.f32.mrf.mxu0
      %v598 = vadd.f32 0.0, %v597
      %599 = vdwg.mxu0
      %v600 = vadd.f32 %v517, %v581
      %v601 = vadd.f32 %v518, %v583
      %v602 = vadd.f32 %v519, %v586
      %v603 = vadd.f32 %v520, %v588
      %v604 = vadd.f32 %v521, %v591
      %v605 = vadd.f32 %v522, %v593
      %v606 = vadd.f32 %v523, %v596
      %v607 = vadd.f32 %v524, %v598
      %v608 = vld [vmem:[%s164] sm:$0xf]
      %v609 = vld [vmem:[%s164 + $0x4] sm:$0x1]
      %v610 = vld [vmem:[%s164 + $0x8] sm:$0xf]
      %v611 = vld [vmem:[%s164 + $0xc] sm:$0x1]
      %v612 = vld [vmem:[%s164 + $0x10] sm:$0xf]
      %v613 = vld [vmem:[%s164 + $0x14] sm:$0x1]
      %v614 = vld [vmem:[%s164 + $0x18] sm:$0xf]
      %v615 = vld [vmem:[%s164 + $0x1c] sm:$0x1]
      %v616 = vld [vmem:[%s164 + $0x20] sm:$0xf]
      %v617 = vld [vmem:[%s164 + $0x24] sm:$0x1]
      %v618 = vld [vmem:[%s164 + $0x28] sm:$0xf]
      %v619 = vld [vmem:[%s164 + $0x2c] sm:$0x1]
      %v620 = vld [vmem:[%s164 + $0x30] sm:$0xf]
      %v621 = vld [vmem:[%s164 + $0x34] sm:$0x1]
      %v622 = vld [vmem:[%s164 + $0x38] sm:$0xf]
      %v623 = vld [vmem:[%s164 + $0x3c] sm:$0x1]
      %v624 = vld [vmem:[%s164 + $0x40] sm:$0xf]
      %v625 = vld [vmem:[%s164 + $0x44] sm:$0x1]
      %vm626 = vsmask.f32 3328
      %vm627 = vsmask.f32 7440
      %vm628 = vmor %vm626, %vm627
      %v630 = vshrl.u32 %v608, 16
      %v632 = vrot.slane %v630, 4
      %v633 = vshll.u32 %v608, 16
      %v635 = vrot.slane %v633, 5
      %v636 = vor.u32 %v632, %v635
      %v637 = vrot.slane %v636, 4
      %v639 = vshll.u32 %v609, 16
      %v641 = vrot.slane %v639, 5
      %v642 = vsel %vm628, %v637, %v641
      %v644 = vshrl.u32 %v610, 16
      %v646 = vrot.slane %v644, 4
      %v647 = vshll.u32 %v610, 16
      %v649 = vrot.slane %v647, 5
      %v650 = vor.u32 %v646, %v649
      %v651 = vrot.slane %v650, 4
      %v653 = vshll.u32 %v611, 16
      %v655 = vrot.slane %v653, 5
      %v656 = vsel %vm628, %v651, %v655
      %v658 = vshrl.u32 %v612, 16
      %v660 = vrot.slane %v658, 4
      %v661 = vshll.u32 %v612, 16
      %v663 = vrot.slane %v661, 5
      %v664 = vor.u32 %v660, %v663
      %v665 = vrot.slane %v664, 4
      %v667 = vshll.u32 %v613, 16
      %v669 = vrot.slane %v667, 5
      %v670 = vsel %vm628, %v665, %v669
      %v672 = vshrl.u32 %v614, 16
      %v674 = vrot.slane %v672, 4
      %v675 = vshll.u32 %v614, 16
      %v677 = vrot.slane %v675, 5
      %v678 = vor.u32 %v674, %v677
      %v679 = vrot.slane %v678, 4
      %v681 = vshll.u32 %v615, 16
      %v683 = vrot.slane %v681, 5
      %v684 = vsel %vm628, %v679, %v683
      %v686 = vshrl.u32 %v616, 16
      %v688 = vrot.slane %v686, 4
      %v689 = vshll.u32 %v616, 16
      %v691 = vrot.slane %v689, 5
      %v692 = vor.u32 %v688, %v691
      %v693 = vrot.slane %v692, 4
      %v695 = vshll.u32 %v617, 16
      %v697 = vrot.slane %v695, 5
      %v698 = vsel %vm628, %v693, %v697
      %v700 = vshrl.u32 %v618, 16
      %v702 = vrot.slane %v700, 4
      %v703 = vshll.u32 %v618, 16
      %v705 = vrot.slane %v703, 5
      %v706 = vor.u32 %v702, %v705
      %v707 = vrot.slane %v706, 4
      %v709 = vshll.u32 %v619, 16
      %v711 = vrot.slane %v709, 5
      %v712 = vsel %vm628, %v707, %v711
      %v714 = vshrl.u32 %v620, 16
      %v716 = vrot.slane %v714, 4
      %v717 = vshll.u32 %v620, 16
      %v719 = vrot.slane %v717, 5
      %v720 = vor.u32 %v716, %v719
      %v721 = vrot.slane %v720, 4
      %v723 = vshll.u32 %v621, 16
      %v725 = vrot.slane %v723, 5
      %v726 = vsel %vm628, %v721, %v725
      %v728 = vshrl.u32 %v622, 16
      %v730 = vrot.slane %v728, 4
      %v731 = vshll.u32 %v622, 16
      %v733 = vrot.slane %v731, 5
      %v734 = vor.u32 %v730, %v733
      %v735 = vrot.slane %v734, 4
      %v737 = vshll.u32 %v623, 16
      %v739 = vrot.slane %v737, 5
      %v740 = vsel %vm628, %v735, %v739
      %s741 = scalar_lea.vmem %s1, 8
      %v742 = vld [vmem:[%s741] sm:$0xf]
      %v743 = vunpack.c.l.b16 %v642
      %v744 = vunpack.c.l.b16 %v656
      %v745 = vunpack.c.l.b16 %v670
      %v746 = vunpack.c.l.b16 %v684
      %v747 = vunpack.c.l.b16 %v698
      %v748 = vunpack.c.l.b16 %v712
      %v749 = vunpack.c.l.b16 %v726
      %v750 = vunpack.c.l.b16 %v740
      %v751 = vpack.c.b16 %v744, %v743
      %v752 = vpack.c.b16 %v746, %v745
      %v753 = vpack.c.b16 %v748, %v747
      %v754 = vpack.c.b16 %v750, %v749
      %v756 = vsel %vm202, %v751, 0
      %v759 = vsel %vm202, %v752, 0
      %v762 = vsel %vm202, %v753, 0
      %v765 = vsel %vm202, %v754, 0
      %v768 = vsel %vm215, %v742, 0
      %770 = vmatpush.bf16.msra.mxu0 0
      %771 = vmatpush.bf16.msra.mxu0 0
      %772 = vmatpush.bf16.msra.mxu0 0
      %773 = vmatpush.bf16.msra.mxu0 0
      %774 = vmatpush.bf16.msra.mxu0 0
      %775 = vmatpush.bf16.msra.mxu0 0
      %776 = vmatpush.bf16.msra.mxu0 0
      %777 = vmatpush.bf16.msra.mxu0 %v768
      %778 = vmatmul.bf16.gmra.mxu0 %v756
      %v779 = vpop.f32.mrf.mxu0
      %v780 = vadd.f32 0.0, %v779
      %v781 = vpop.f32.mrf.mxu0
      %v782 = vadd.f32 0.0, %v781
      %783 = vmatmul.bf16.gmra.mxu0 %v759
      %v784 = vpop.f32.mrf.mxu0
      %v785 = vadd.f32 0.0, %v784
      %v786 = vpop.f32.mrf.mxu0
      %v787 = vadd.f32 0.0, %v786
      %788 = vmatmul.bf16.gmra.mxu0 %v762
      %v789 = vpop.f32.mrf.mxu0
      %v790 = vadd.f32 0.0, %v789
      %v791 = vpop.f32.mrf.mxu0
      %v792 = vadd.f32 0.0, %v791
      %793 = vmatmul.bf16.gmra.mxu0 %v765
      %v794 = vpop.f32.mrf.mxu0
      %v795 = vadd.f32 0.0, %v794
      %v796 = vpop.f32.mrf.mxu0
      %v797 = vadd.f32 0.0, %v796
      %798 = vdwg.mxu0
      %v799 = vadd.f32 %v600, %v780
      %v800 = vadd.f32 %v601, %v782
      %v801 = vadd.f32 %v602, %v785
      %v802 = vadd.f32 %v603, %v787
      %v803 = vadd.f32 %v604, %v790
      %v804 = vadd.f32 %v605, %v792
      %v805 = vadd.f32 %v606, %v795
      %v806 = vadd.f32 %v607, %v797
      %v808 = vshrl.u32 %v624, 16
      %v810 = vrot.slane %v808, 4
      %v811 = vshll.u32 %v624, 16
      %v813 = vrot.slane %v811, 5
      %v814 = vor.u32 %v810, %v813
      %v815 = vrot.slane %v814, 4
      %v817 = vshll.u32 %v625, 16
      %v819 = vrot.slane %v817, 5
      %v820 = vsel %vm628, %v815, %v819
      %s821 = scalar_lea.vmem %s1, 32
      %v822 = vld [vmem:[%s821] sm:$0xf]
      %v823 = vunpack.c.l.b16 %v820
      %v824 = vpack.c.b16 %v745, %v744
      %v825 = vpack.c.b16 %v747, %v746
      %v826 = vpack.c.b16 %v749, %v748
      %v827 = vpack.c.b16 %v823, %v750
      %v829 = vsel %vm202, %v824, 0
      %v832 = vsel %vm202, %v825, 0
      %v835 = vsel %vm202, %v826, 0
      %v838 = vsel %vm202, %v827, 0
      %v841 = vsel %vm215, %v822, 0
      %843 = vmatpush.bf16.msra.mxu0 0
      %844 = vmatpush.bf16.msra.mxu0 0
      %845 = vmatpush.bf16.msra.mxu0 0
      %846 = vmatpush.bf16.msra.mxu0 0
      %847 = vmatpush.bf16.msra.mxu0 0
      %848 = vmatpush.bf16.msra.mxu0 0
      %849 = vmatpush.bf16.msra.mxu0 0
      %850 = vmatpush.bf16.msra.mxu0 %v841
      %851 = vmatmul.bf16.gmra.mxu0 %v829
      %v852 = vpop.f32.mrf.mxu0
      %v853 = vadd.f32 0.0, %v852
      %v854 = vpop.f32.mrf.mxu0
      %v855 = vadd.f32 0.0, %v854
      %856 = vmatmul.bf16.gmra.mxu0 %v832
      %v857 = vpop.f32.mrf.mxu0
      %v858 = vadd.f32 0.0, %v857
      %v859 = vpop.f32.mrf.mxu0
      %v860 = vadd.f32 0.0, %v859
      %861 = vmatmul.bf16.gmra.mxu0 %v835
      %v862 = vpop.f32.mrf.mxu0
      %v863 = vadd.f32 0.0, %v862
      %v864 = vpop.f32.mrf.mxu0
      %v865 = vadd.f32 0.0, %v864
      %866 = vmatmul.bf16.gmra.mxu0 %v838
      %v867 = vpop.f32.mrf.mxu0
      %v868 = vadd.f32 0.0, %v867
      %v869 = vpop.f32.mrf.mxu0
      %v870 = vadd.f32 0.0, %v869
      %871 = vdwg.mxu0
      %v872 = vadd.f32 %v799, %v853
      %v873 = vadd.f32 %v800, %v855
      %v874 = vadd.f32 %v801, %v858
      %v875 = vadd.f32 %v802, %v860
      %v876 = vadd.f32 %v803, %v863
      %v877 = vadd.f32 %v804, %v865
      %v878 = vadd.f32 %v805, %v868
      %v879 = vadd.f32 %v806, %v870
      %v880 = vld [vmem:[%s298] sm:$0xf]
      %v881 = vld [vmem:[%s298 + $0x4] sm:$0x1]
      %v882 = vld [vmem:[%s298 + $0x8] sm:$0xf]
      %v883 = vld [vmem:[%s298 + $0xc] sm:$0x1]
      %v884 = vld [vmem:[%s298 + $0x10] sm:$0xf]
      %v885 = vld [vmem:[%s298 + $0x14] sm:$0x1]
      %v886 = vld [vmem:[%s298 + $0x18] sm:$0xf]
      %v887 = vld [vmem:[%s298 + $0x1c] sm:$0x1]
      %v888 = vld [vmem:[%s298 + $0x20] sm:$0xf]
      %v889 = vld [vmem:[%s298 + $0x24] sm:$0x1]
      %v890 = vld [vmem:[%s298 + $0x28] sm:$0xf]
      %v891 = vld [vmem:[%s298 + $0x2c] sm:$0x1]
      %v892 = vld [vmem:[%s298 + $0x30] sm:$0xf]
      %v893 = vld [vmem:[%s298 + $0x34] sm:$0x1]
      %v894 = vld [vmem:[%s298 + $0x38] sm:$0xf]
      %v895 = vld [vmem:[%s298 + $0x3c] sm:$0x1]
      %v897 = vshrl.u32 %v880, 16
      %v899 = vrot.slane %v897, 4
      %v900 = vshll.u32 %v880, 16
      %v902 = vrot.slane %v900, 5
      %v903 = vor.u32 %v899, %v902
      %v904 = vrot.slane %v903, 4
      %v906 = vshll.u32 %v881, 16
      %v908 = vrot.slane %v906, 5
      %v909 = vsel %vm628, %v904, %v908
      %v911 = vshrl.u32 %v882, 16
      %v913 = vrot.slane %v911, 4
      %v914 = vshll.u32 %v882, 16
      %v916 = vrot.slane %v914, 5
      %v917 = vor.u32 %v913, %v916
      %v918 = vrot.slane %v917, 4
      %v920 = vshll.u32 %v883, 16
      %v922 = vrot.slane %v920, 5
      %v923 = vsel %vm628, %v918, %v922
      %v925 = vshrl.u32 %v884, 16
      %v927 = vrot.slane %v925, 4
      %v928 = vshll.u32 %v884, 16
      %v930 = vrot.slane %v928, 5
      %v931 = vor.u32 %v927, %v930
      %v932 = vrot.slane %v931, 4
      %v934 = vshll.u32 %v885, 16
      %v936 = vrot.slane %v934, 5
      %v937 = vsel %vm628, %v932, %v936
      %v939 = vshrl.u32 %v886, 16
      %v941 = vrot.slane %v939, 4
      %v942 = vshll.u32 %v886, 16
      %v944 = vrot.slane %v942, 5
      %v945 = vor.u32 %v941, %v944
      %v946 = vrot.slane %v945, 4
      %v948 = vshll.u32 %v887, 16
      %v950 = vrot.slane %v948, 5
      %v951 = vsel %vm628, %v946, %v950
      %v953 = vshrl.u32 %v888, 16
      %v955 = vrot.slane %v953, 4
      %v956 = vshll.u32 %v888, 16
      %v958 = vrot.slane %v956, 5
      %v959 = vor.u32 %v955, %v958
      %v960 = vrot.slane %v959, 4
      %v962 = vshll.u32 %v889, 16
      %v964 = vrot.slane %v962, 5
      %v965 = vsel %vm628, %v960, %v964
      %v967 = vshrl.u32 %v890, 16
      %v969 = vrot.slane %v967, 4
      %v970 = vshll.u32 %v890, 16
      %v972 = vrot.slane %v970, 5
      %v973 = vor.u32 %v969, %v972
      %v974 = vrot.slane %v973, 4
      %v976 = vshll.u32 %v891, 16
      %v978 = vrot.slane %v976, 5
      %v979 = vsel %vm628, %v974, %v978
      %v981 = vshrl.u32 %v892, 16
      %v983 = vrot.slane %v981, 4
      %v984 = vshll.u32 %v892, 16
      %v986 = vrot.slane %v984, 5
      %v987 = vor.u32 %v983, %v986
      %v988 = vrot.slane %v987, 4
      %v990 = vshll.u32 %v893, 16
      %v992 = vrot.slane %v990, 5
      %v993 = vsel %vm628, %v988, %v992
      %v995 = vshrl.u32 %v894, 16
      %v997 = vrot.slane %v995, 4
      %v998 = vshll.u32 %v894, 16
      %v1000 = vrot.slane %v998, 5
      %v1001 = vor.u32 %v997, %v1000
      %v1002 = vrot.slane %v1001, 4
      %v1004 = vshll.u32 %v895, 16
      %v1006 = vrot.slane %v1004, 5
      %v1007 = vsel %vm628, %v1002, %v1006
      %s1008 = scalar_lea.vmem %s1, 20
      %v1009 = vld [vmem:[%s1008] sm:$0xf]
      %v1010 = vunpack.c.l.b16 %v909
      %v1011 = vunpack.c.l.b16 %v923
      %v1012 = vunpack.c.l.b16 %v937
      %v1013 = vunpack.c.l.b16 %v951
      %v1014 = vunpack.c.l.b16 %v965
      %v1015 = vunpack.c.l.b16 %v979
      %v1016 = vunpack.c.l.b16 %v993
      %v1017 = vunpack.c.l.b16 %v1007
      %v1018 = vpack.c.b16 %v1011, %v1010
      %v1019 = vpack.c.b16 %v1013, %v1012
      %v1020 = vpack.c.b16 %v1015, %v1014
      %v1021 = vpack.c.b16 %v1017, %v1016
      %v1023 = vsel %vm202, %v1018, 0
      %v1026 = vsel %vm202, %v1019, 0
      %v1029 = vsel %vm202, %v1020, 0
      %v1032 = vsel %vm202, %v1021, 0
      %v1035 = vsel %vm215, %v1009, 0
      %1037 = vmatpush.bf16.msra.mxu0 0
      %1038 = vmatpush.bf16.msra.mxu0 0
      %1039 = vmatpush.bf16.msra.mxu0 0
      %1040 = vmatpush.bf16.msra.mxu0 0
      %1041 = vmatpush.bf16.msra.mxu0 0
      %1042 = vmatpush.bf16.msra.mxu0 0
      %1043 = vmatpush.bf16.msra.mxu0 0
      %1044 = vmatpush.bf16.msra.mxu0 %v1035
      %1045 = vmatmul.bf16.gmra.mxu0 %v1023
      %v1046 = vpop.f32.mrf.mxu0
      %v1047 = vadd.f32 0.0, %v1046
      %v1048 = vpop.f32.mrf.mxu0
      %v1049 = vadd.f32 0.0, %v1048
      %1050 = vmatmul.bf16.gmra.mxu0 %v1026
      %v1051 = vpop.f32.mrf.mxu0
      %v1052 = vadd.f32 0.0, %v1051
      %v1053 = vpop.f32.mrf.mxu0
      %v1054 = vadd.f32 0.0, %v1053
      %1055 = vmatmul.bf16.gmra.mxu0 %v1029
      %v1056 = vpop.f32.mrf.mxu0
      %v1057 = vadd.f32 0.0, %v1056
      %v1058 = vpop.f32.mrf.mxu0
      %v1059 = vadd.f32 0.0, %v1058
      %1060 = vmatmul.bf16.gmra.mxu0 %v1032
      %v1061 = vpop.f32.mrf.mxu0
      %v1062 = vadd.f32 0.0, %v1061
      %v1063 = vpop.f32.mrf.mxu0
      %v1064 = vadd.f32 0.0, %v1063
      %1065 = vdwg.mxu0
      %v1066 = vadd.f32 %v872, %v1047
      %v1067 = vadd.f32 %v873, %v1049
      %v1068 = vadd.f32 %v874, %v1052
      %v1069 = vadd.f32 %v875, %v1054
      %v1070 = vadd.f32 %v876, %v1057
      %v1071 = vadd.f32 %v877, %v1059
      %v1072 = vadd.f32 %v878, %v1062
      %v1073 = vadd.f32 %v879, %v1064
      %vm1074 = vcmask 60419
      %vm1075 = vsmask.f32 7950
      %vm1076 = vmand %vm1074, %vm1075
      %v1077 = vld [vmem:[#allocation2] sm:$0x8]
      %v1078 = vsel %vm1076, 0, %v1077
      %1079 = vst [vmem:[#allocation2] sm:$0x8] %v1078
      %vm1080 = vcmask 60416
      %1081 = vst.msk [vmem:[#allocation2 + $0x4] sm:$0xf] %vm1080, 0
      %vm1082 = vcmask 57344
      %vm1083 = vsmask.f32 256
      %vm1084 = vmand %vm1082, %vm1083
      %v1085 = vld [vmem:[#allocation2 + $0x8] sm:$0x1]
      %v1086 = vsel %vm1084, 0, %v1085
      %1087 = vst [vmem:[#allocation2 + $0x8] sm:$0x1] %v1086
      %s1088 = scalar_lea.vmem [#allocation2], 108
      %v1089 = vld [vmem:[%s1088] sm:$0x8]
      %v1090 = vsel %vm1076, 0, %v1089
      %1091 = vst [vmem:[%s1088] sm:$0x8] %v1090
      %1092 = vst.msk [vmem:[%s1088 + $0x4] sm:$0xf] %vm1080, 0
      %v1093 = vld [vmem:[%s1088 + $0x8] sm:$0x1]
      %v1094 = vsel %vm1084, 0, %v1093
      %1095 = vst [vmem:[%s1088 + $0x8] sm:$0x1] %v1094
      %v1096 = vld [vmem:[#allocation2] sm:$0x8]
      %v1097 = vsel %vm1076, 0, %v1096
      %1098 = vst [vmem:[#allocation2] sm:$0x8] %v1097
      %v1099 = vld [vmem:[#allocation2 + $0xc] sm:$0x8]
      %v1100 = vsel %vm1076, 0, %v1099
      %1101 = vst [vmem:[#allocation2 + $0xc] sm:$0x8] %v1100
      %v1102 = vld [vmem:[#allocation2 + $0x18] sm:$0x8]
      %v1103 = vsel %vm1076, 0, %v1102
      %1104 = vst [vmem:[#allocation2 + $0x18] sm:$0x8] %v1103
      %v1105 = vld [vmem:[#allocation2 + $0x24] sm:$0x8]
      %v1106 = vsel %vm1076, 0, %v1105
      %1107 = vst [vmem:[#allocation2 + $0x24] sm:$0x8] %v1106
      %v1108 = vld [vmem:[#allocation2 + $0x30] sm:$0x8]
      %v1109 = vsel %vm1076, 0, %v1108
      %1110 = vst [vmem:[#allocation2 + $0x30] sm:$0x8] %v1109
      %v1111 = vld [vmem:[#allocation2 + $0x3c] sm:$0x8]
      %v1112 = vsel %vm1076, 0, %v1111
      %1113 = vst [vmem:[#allocation2 + $0x3c] sm:$0x8] %v1112
      %v1114 = vld [vmem:[#allocation2 + $0x48] sm:$0x8]
      %v1115 = vsel %vm1076, 0, %v1114
      %1116 = vst [vmem:[#allocation2 + $0x48] sm:$0x8] %v1115
      %v1117 = vld [vmem:[#allocation2 + $0x54] sm:$0x8]
      %v1118 = vsel %vm1076, 0, %v1117
      %1119 = vst [vmem:[#allocation2 + $0x54] sm:$0x8] %v1118
      %v1120 = vld [vmem:[#allocation2 + $0x60] sm:$0x8]
      %v1121 = vsel %vm1076, 0, %v1120
      %1122 = vst [vmem:[#allocation2 + $0x60] sm:$0x8] %v1121
      %v1123 = vld [vmem:[#allocation2 + $0x6c] sm:$0x8]
      %v1124 = vsel %vm1076, 0, %v1123
      %1125 = vst [vmem:[#allocation2 + $0x6c] sm:$0x8] %v1124
      %v1126 = vld [vmem:[#allocation2 + $0x8] sm:$0x1]
      %v1127 = vsel %vm1084, 0, %v1126
      %1128 = vst [vmem:[#allocation2 + $0x8] sm:$0x1] %v1127
      %v1129 = vld [vmem:[#allocation2 + $0x14] sm:$0x1]
      %v1130 = vsel %vm1084, 0, %v1129
      %1131 = vst [vmem:[#allocation2 + $0x14] sm:$0x1] %v1130
      %v1132 = vld [vmem:[#allocation2 + $0x20] sm:$0x1]
      %v1133 = vsel %vm1084, 0, %v1132
      %1134 = vst [vmem:[#allocation2 + $0x20] sm:$0x1] %v1133
      %v1135 = vld [vmem:[#allocation2 + $0x2c] sm:$0x1]
      %v1136 = vsel %vm1084, 0, %v1135
      %1137 = vst [vmem:[#allocation2 + $0x2c] sm:$0x1] %v1136
      %v1138 = vld [vmem:[#allocation2 + $0x38] sm:$0x1]
      %v1139 = vsel %vm1084, 0, %v1138
      %1140 = vst [vmem:[#allocation2 + $0x38] sm:$0x1] %v1139
      %v1141 = vld [vmem:[#allocation2 + $0x44] sm:$0x1]
      %v1142 = vsel %vm1084, 0, %v1141
      %1143 = vst [vmem:[#allocation2 + $0x44] sm:$0x1] %v1142
      %v1144 = vld [vmem:[#allocation2 + $0x50] sm:$0x1]
      %v1145 = vsel %vm1084, 0, %v1144
      %1146 = vst [vmem:[#allocation2 + $0x50] sm:$0x1] %v1145
      %v1147 = vld [vmem:[#allocation2 + $0x5c] sm:$0x1]
      %v1148 = vsel %vm1084, 0, %v1147
      %1149 = vst [vmem:[#allocation2 + $0x5c] sm:$0x1] %v1148
      %v1150 = vld [vmem:[#allocation2 + $0x68] sm:$0x1]
      %v1151 = vsel %vm1084, 0, %v1150
      %1152 = vst [vmem:[#allocation2 + $0x68] sm:$0x1] %v1151
      %v1153 = vld [vmem:[#allocation2 + $0x74] sm:$0x1]
      %v1154 = vsel %vm1084, 0, %v1153
      %1155 = vst [vmem:[#allocation2 + $0x74] sm:$0x1] %v1154
      %v1156 = vpack.c.bf16 %v1066, %v1066
      %v1157 = vpack.c.bf16 %v1067, %v1067
      %v1158 = vpack.c.bf16 %v1068, %v1068
      %v1159 = vpack.c.bf16 %v1069, %v1069
      %v1160 = vpack.c.bf16 %v1070, %v1070
      %v1161 = vpack.c.bf16 %v1071, %v1071
      %v1162 = vpack.c.bf16 %v1072, %v1072
      %v1163 = vpack.c.bf16 %v1073, %v1073
      %s1164 = scalar_lea.vmem [#allocation2], 12
      %1165 = vst.msk [vmem:[%s1164 + $0x4] sm:$0xf] %vm1080, %v1156
      %1166 = vst.msk [vmem:[%s1164 + $0x10] sm:$0xf] %vm1080, %v1157
      %1167 = vst.msk [vmem:[%s1164 + $0x1c] sm:$0xf] %vm1080, %v1158
      %1168 = vst.msk [vmem:[%s1164 + $0x28] sm:$0xf] %vm1080, %v1159
      %1169 = vst.msk [vmem:[%s1164 + $0x34] sm:$0xf] %vm1080, %v1160
      %1170 = vst.msk [vmem:[%s1164 + $0x40] sm:$0xf] %vm1080, %v1161
      %1171 = vst.msk [vmem:[%s1164 + $0x4c] sm:$0xf] %vm1080, %v1162
      %1172 = vst.msk [vmem:[%s1164 + $0x58] sm:$0xf] %vm1080, %v1163
      %v1173 = vld [vmem:[#allocation2] sm:$0x8]
      %v1174 = vld [vmem:[#allocation2 + $0x4] sm:$0xf]
      %v1175 = vld [vmem:[#allocation2 + $0xc] sm:$0x8]
      %v1176 = vld [vmem:[#allocation2 + $0x10] sm:$0xf]
      %v1177 = vld [vmem:[#allocation2 + $0x18] sm:$0x8]
      %v1178 = vld [vmem:[#allocation2 + $0x1c] sm:$0xf]
      %v1179 = vld [vmem:[#allocation2 + $0x24] sm:$0x8]
      %v1180 = vld [vmem:[#allocation2 + $0x28] sm:$0xf]
      %v1181 = vld [vmem:[#allocation2 + $0x30] sm:$0x8]
      %v1182 = vld [vmem:[#allocation2 + $0x34] sm:$0xf]
      %v1183 = vld [vmem:[#allocation2 + $0x3c] sm:$0x8]
      %v1184 = vld [vmem:[#allocation2 + $0x40] sm:$0xf]
      %v1185 = vld [vmem:[#allocation2 + $0x48] sm:$0x8]
      %v1186 = vld [vmem:[#allocation2 + $0x4c] sm:$0xf]
      %v1187 = vld [vmem:[#allocation2 + $0x54] sm:$0x8]
      %v1188 = vld [vmem:[#allocation2 + $0x58] sm:$0xf]
      %v1189 = vld [vmem:[#allocation2 + $0x60] sm:$0x8]
      %v1190 = vld [vmem:[#allocation2 + $0x64] sm:$0xf]
      %v1191 = vld [vmem:[#allocation2 + $0x6c] sm:$0x8]
      %v1192 = vld [vmem:[#allocation2 + $0x70] sm:$0xf]
      %vm1193 = vsmask.f32 4368
      %vm1194 = vmor %vm1083, %vm1193
      %v1196 = vshrl.u32 %v1173, 16
      %v1198 = vrot.slane %v1196, 7
      %v1199 = vrot.slane %v1198, 4
      %v1201 = vshrl.u32 %v1174, 16
      %v1203 = vrot.slane %v1201, 7
      %v1204 = vshll.u32 %v1174, 16
      %v1206 = vor.u32 %v1203, %v1204
      %v1207 = vsel %vm1194, %v1199, %v1206
      %v1209 = vshrl.u32 %v1175, 16
      %v1211 = vrot.slane %v1209, 7
      %v1212 = vrot.slane %v1211, 4
      %v1214 = vshrl.u32 %v1176, 16
      %v1216 = vrot.slane %v1214, 7
      %v1217 = vshll.u32 %v1176, 16
      %v1219 = vor.u32 %v1216, %v1217
      %v1220 = vsel %vm1194, %v1212, %v1219
      %v1222 = vshrl.u32 %v1177, 16
      %v1224 = vrot.slane %v1222, 7
      %v1225 = vrot.slane %v1224, 4
      %v1227 = vshrl.u32 %v1178, 16
      %v1229 = vrot.slane %v1227, 7
      %v1230 = vshll.u32 %v1178, 16
      %v1232 = vor.u32 %v1229, %v1230
      %v1233 = vsel %vm1194, %v1225, %v1232
      %v1235 = vshrl.u32 %v1179, 16
      %v1237 = vrot.slane %v1235, 7
      %v1238 = vrot.slane %v1237, 4
      %v1240 = vshrl.u32 %v1180, 16
      %v1242 = vrot.slane %v1240, 7
      %v1243 = vshll.u32 %v1180, 16
      %v1245 = vor.u32 %v1242, %v1243
      %v1246 = vsel %vm1194, %v1238, %v1245
      %v1248 = vshrl.u32 %v1181, 16
      %v1250 = vrot.slane %v1248, 7
      %v1251 = vrot.slane %v1250, 4
      %v1253 = vshrl.u32 %v1182, 16
      %v1255 = vrot.slane %v1253, 7
      %v1256 = vshll.u32 %v1182, 16
      %v1258 = vor.u32 %v1255, %v1256
      %v1259 = vsel %vm1194, %v1251, %v1258
      %v1261 = vshrl.u32 %v1183, 16
      %v1263 = vrot.slane %v1261, 7
      %v1264 = vrot.slane %v1263, 4
      %v1266 = vshrl.u32 %v1184, 16
      %v1268 = vrot.slane %v1266, 7
      %v1269 = vshll.u32 %v1184, 16
      %v1271 = vor.u32 %v1268, %v1269
      %v1272 = vsel %vm1194, %v1264, %v1271
      %v1274 = vshrl.u32 %v1185, 16
      %v1276 = vrot.slane %v1274, 7
      %v1277 = vrot.slane %v1276, 4
      %v1279 = vshrl.u32 %v1186, 16
      %v1281 = vrot.slane %v1279, 7
      %v1282 = vshll.u32 %v1186, 16
      %v1284 = vor.u32 %v1281, %v1282
      %v1285 = vsel %vm1194, %v1277, %v1284
      %v1287 = vshrl.u32 %v1187, 16
      %v1289 = vrot.slane %v1287, 7
      %v1290 = vrot.slane %v1289, 4
      %v1292 = vshrl.u32 %v1188, 16
      %v1294 = vrot.slane %v1292, 7
      %v1295 = vshll.u32 %v1188, 16
      %v1297 = vor.u32 %v1294, %v1295
      %v1298 = vsel %vm1194, %v1290, %v1297
      %v1299 = vld [vmem:[%s2] sm:$0xf]
      %v1301 = vshrl.u32 %v1189, 16
      %v1303 = vrot.slane %v1301, 7
      %v1304 = vrot.slane %v1303, 4
      %v1306 = vshrl.u32 %v1190, 16
      %v1308 = vrot.slane %v1306, 7
      %v1309 = vshll.u32 %v1190, 16
      %v1311 = vor.u32 %v1308, %v1309
      %v1312 = vsel %vm1194, %v1304, %v1311
      %s1313 = scalar_lea.vmem %s2, 12
      %v1314 = vld [vmem:[%s1313] sm:$0xf]
      %v1315 = vunpack.c.l.b16 %v1220
      %v1316 = vunpack.c.l.b16 %v1233
      %v1317 = vunpack.c.l.b16 %v1246
      %v1318 = vunpack.c.l.b16 %v1259
      %v1319 = vunpack.c.l.b16 %v1272
      %v1320 = vunpack.c.l.b16 %v1285
      %v1321 = vunpack.c.l.b16 %v1298
      %v1322 = vunpack.c.l.b16 %v1312
      %v1323 = vpack.c.b16 %v1316, %v1315
      %v1324 = vpack.c.b16 %v1318, %v1317
      %v1325 = vpack.c.b16 %v1320, %v1319
      %v1326 = vpack.c.b16 %v1322, %v1321
      %v1328 = vsel %vm202, %v1323, 0
      %v1331 = vsel %vm202, %v1324, 0
      %v1334 = vsel %vm202, %v1325, 0
      %v1337 = vsel %vm202, %v1326, 0
      %v1340 = vsel %vm215, %v1314, 0
      %1342 = vmatpush.bf16.msra.mxu0 0
      %1343 = vmatpush.bf16.msra.mxu0 0
      %1344 = vmatpush.bf16.msra.mxu0 0
      %1345 = vmatpush.bf16.msra.mxu0 0
      %1346 = vmatpush.bf16.msra.mxu0 0
      %1347 = vmatpush.bf16.msra.mxu0 0
      %1348 = vmatpush.bf16.msra.mxu0 0
      %1349 = vmatpush.bf16.msra.mxu0 %v1340
      %1350 = vmatmul.bf16.gmra.mxu0 %v1328
      %v1351 = vpop.f32.mrf.mxu0
      %v1352 = vadd.f32 0.0, %v1351
      %v1353 = vpop.f32.mrf.mxu0
      %v1354 = vadd.f32 0.0, %v1353
      %1355 = vmatmul.bf16.gmra.mxu0 %v1331
      %v1356 = vpop.f32.mrf.mxu0
      %v1357 = vadd.f32 0.0, %v1356
      %v1358 = vpop.f32.mrf.mxu0
      %v1359 = vadd.f32 0.0, %v1358
      %1360 = vmatmul.bf16.gmra.mxu0 %v1334
      %v1361 = vpop.f32.mrf.mxu0
      %v1362 = vadd.f32 0.0, %v1361
      %v1363 = vpop.f32.mrf.mxu0
      %v1364 = vadd.f32 0.0, %v1363
      %1365 = vmatmul.bf16.gmra.mxu0 %v1337
      %v1366 = vpop.f32.mrf.mxu0
      %v1367 = vadd.f32 0.0, %v1366
      %v1368 = vpop.f32.mrf.mxu0
      %v1369 = vadd.f32 0.0, %v1368
      %1370 = vdwg.mxu0
      %v1371 = vunpack.c.l.b16 %v1207
      %v1372 = vpack.c.b16 %v1315, %v1371
      %v1373 = vpack.c.b16 %v1317, %v1316
      %v1374 = vpack.c.b16 %v1319, %v1318
      %v1375 = vpack.c.b16 %v1321, %v1320
      %v1377 = vsel %vm202, %v1372, 0
      %v1380 = vsel %vm202, %v1373, 0
      %v1383 = vsel %vm202, %v1374, 0
      %v1386 = vsel %vm202, %v1375, 0
      %v1389 = vsel %vm215, %v1299, 0
      %1391 = vmatpush.bf16.msra.mxu0 0
      %1392 = vmatpush.bf16.msra.mxu0 0
      %1393 = vmatpush.bf16.msra.mxu0 0
      %1394 = vmatpush.bf16.msra.mxu0 0
      %1395 = vmatpush.bf16.msra.mxu0 0
      %1396 = vmatpush.bf16.msra.mxu0 0
      %1397 = vmatpush.bf16.msra.mxu0 0
      %1398 = vmatpush.bf16.msra.mxu0 %v1389
      %1399 = vmatmul.bf16.gmra.mxu0 %v1377
      %v1400 = vpop.f32.mrf.mxu0
      %v1401 = vadd.f32 %v1352, %v1400
      %v1402 = vpop.f32.mrf.mxu0
      %v1403 = vadd.f32 %v1354, %v1402
      %1404 = vmatmul.bf16.gmra.mxu0 %v1380
      %v1405 = vpop.f32.mrf.mxu0
      %v1406 = vadd.f32 %v1357, %v1405
      %v1407 = vpop.f32.mrf.mxu0
      %v1408 = vadd.f32 %v1359, %v1407
      %1409 = vmatmul.bf16.gmra.mxu0 %v1383
      %v1410 = vpop.f32.mrf.mxu0
      %v1411 = vadd.f32 %v1362, %v1410
      %v1412 = vpop.f32.mrf.mxu0
      %v1413 = vadd.f32 %v1364, %v1412
      %1414 = vmatmul.bf16.gmra.mxu0 %v1386
      %v1415 = vpop.f32.mrf.mxu0
      %v1416 = vadd.f32 %v1367, %v1415
      %v1417 = vpop.f32.mrf.mxu0
      %v1418 = vadd.f32 %v1369, %v1417
      %1419 = vdwg.mxu0
      %v1421 = vshrl.u32 %v1191, 16
      %v1423 = vrot.slane %v1421, 7
      %v1424 = vrot.slane %v1423, 4
      %v1426 = vshrl.u32 %v1192, 16
      %v1428 = vrot.slane %v1426, 7
      %v1429 = vshll.u32 %v1192, 16
      %v1431 = vor.u32 %v1428, %v1429
      %v1432 = vsel %vm1194, %v1424, %v1431
      %s1433 = scalar_lea.vmem %s2, 24
      %v1434 = vld [vmem:[%s1433] sm:$0xf]
      %v1435 = vunpack.c.l.b16 %v1432
      %v1436 = vpack.c.b16 %v1435, %v1322
      %v1438 = vsel %vm202, %v1436, 0
      %v1441 = vsel %vm215, %v1434, 0
      %1443 = vmatpush.bf16.msra.mxu0 0
      %1444 = vmatpush.bf16.msra.mxu0 0
      %1445 = vmatpush.bf16.msra.mxu0 0
      %1446 = vmatpush.bf16.msra.mxu0 0
      %1447 = vmatpush.bf16.msra.mxu0 0
      %1448 = vmatpush.bf16.msra.mxu0 0
      %1449 = vmatpush.bf16.msra.mxu0 0
      %1450 = vmatpush.bf16.msra.mxu0 %v1441
      %1451 = vmatmul.bf16.gmra.mxu0 %v1380
      %v1452 = vpop.f32.mrf.mxu0
      %v1453 = vadd.f32 0.0, %v1452
      %v1454 = vpop.f32.mrf.mxu0
      %v1455 = vadd.f32 0.0, %v1454
      %1456 = vmatmul.bf16.gmra.mxu0 %v1383
      %v1457 = vpop.f32.mrf.mxu0
      %v1458 = vadd.f32 0.0, %v1457
      %v1459 = vpop.f32.mrf.mxu0
      %v1460 = vadd.f32 0.0, %v1459
      %1461 = vmatmul.bf16.gmra.mxu0 %v1386
      %v1462 = vpop.f32.mrf.mxu0
      %v1463 = vadd.f32 0.0, %v1462
      %v1464 = vpop.f32.mrf.mxu0
      %v1465 = vadd.f32 0.0, %v1464
      %1466 = vmatmul.bf16.gmra.mxu0 %v1438
      %v1467 = vpop.f32.mrf.mxu0
      %v1468 = vadd.f32 0.0, %v1467
      %v1469 = vpop.f32.mrf.mxu0
      %v1470 = vadd.f32 0.0, %v1469
      %1471 = vdwg.mxu0
      %v1472 = vadd.f32 %v1401, %v1453
      %v1473 = vadd.f32 %v1403, %v1455
      %v1474 = vadd.f32 %v1406, %v1458
      %v1475 = vadd.f32 %v1408, %v1460
      %v1476 = vadd.f32 %v1411, %v1463
      %v1477 = vadd.f32 %v1413, %v1465
      %v1478 = vadd.f32 %v1416, %v1468
      %v1479 = vadd.f32 %v1418, %v1470
      %s1480 = scalar_lea.vmem %s2, 4
      %v1481 = vld [vmem:[%s1480] sm:$0xf]
      %v1490 = vunpack.c.l.b16 %v1174
      %v1491 = vunpack.c.l.b16 %v1176
      %v1492 = vunpack.c.l.b16 %v1178
      %v1493 = vunpack.c.l.b16 %v1180
      %v1494 = vunpack.c.l.b16 %v1182
      %v1495 = vunpack.c.l.b16 %v1184
      %v1496 = vunpack.c.l.b16 %v1186
      %v1497 = vunpack.c.l.b16 %v1188
      %v1498 = vpack.c.b16 %v1491, %v1490
      %v1499 = vpack.c.b16 %v1493, %v1492
      %v1500 = vpack.c.b16 %v1495, %v1494
      %v1501 = vpack.c.b16 %v1497, %v1496
      %v1503 = vsel %vm202, %v1498, 0
      %v1506 = vsel %vm202, %v1499, 0
      %v1509 = vsel %vm202, %v1500, 0
      %v1512 = vsel %vm202, %v1501, 0
      %v1515 = vsel %vm215, %v1481, 0
      %1517 = vmatpush.bf16.msra.mxu0 0
      %1518 = vmatpush.bf16.msra.mxu0 0
      %1519 = vmatpush.bf16.msra.mxu0 0
      %1520 = vmatpush.bf16.msra.mxu0 0
      %1521 = vmatpush.bf16.msra.mxu0 0
      %1522 = vmatpush.bf16.msra.mxu0 0
      %1523 = vmatpush.bf16.msra.mxu0 0
      %1524 = vmatpush.bf16.msra.mxu0 %v1515
      %1525 = vmatmul.bf16.gmra.mxu0 %v1503
      %v1526 = vpop.f32.mrf.mxu0
      %v1527 = vadd.f32 0.0, %v1526
      %v1528 = vpop.f32.mrf.mxu0
      %v1529 = vadd.f32 0.0, %v1528
      %1530 = vmatmul.bf16.gmra.mxu0 %v1506
      %v1531 = vpop.f32.mrf.mxu0
      %v1532 = vadd.f32 0.0, %v1531
      %v1533 = vpop.f32.mrf.mxu0
      %v1534 = vadd.f32 0.0, %v1533
      %1535 = vmatmul.bf16.gmra.mxu0 %v1509
      %v1536 = vpop.f32.mrf.mxu0
      %v1537 = vadd.f32 0.0, %v1536
      %v1538 = vpop.f32.mrf.mxu0
      %v1539 = vadd.f32 0.0, %v1538
      %1540 = vmatmul.bf16.gmra.mxu0 %v1512
      %v1541 = vpop.f32.mrf.mxu0
      %v1542 = vadd.f32 0.0, %v1541
      %v1543 = vpop.f32.mrf.mxu0
      %v1544 = vadd.f32 0.0, %v1543
      %1545 = vdwg.mxu0
      %v1546 = vadd.f32 %v1472, %v1527
      %v1547 = vadd.f32 %v1473, %v1529
      %v1548 = vadd.f32 %v1474, %v1532
      %v1549 = vadd.f32 %v1475, %v1534
      %v1550 = vadd.f32 %v1476, %v1537
      %v1551 = vadd.f32 %v1477, %v1539
      %v1552 = vadd.f32 %v1478, %v1542
      %v1553 = vadd.f32 %v1479, %v1544
      %s1554 = scalar_lea.vmem %s2, 16
      %v1555 = vld [vmem:[%s1554] sm:$0xf]
      %v1557 = vunpack.c.l.b16 %v1190
      %v1558 = vpack.c.b16 %v1492, %v1491
      %v1559 = vpack.c.b16 %v1494, %v1493
      %v1560 = vpack.c.b16 %v1496, %v1495
      %v1561 = vpack.c.b16 %v1557, %v1497
      %v1563 = vsel %vm202, %v1558, 0
      %v1566 = vsel %vm202, %v1559, 0
      %v1569 = vsel %vm202, %v1560, 0
      %v1572 = vsel %vm202, %v1561, 0
      %v1575 = vsel %vm215, %v1555, 0
      %1577 = vmatpush.bf16.msra.mxu0 0
      %1578 = vmatpush.bf16.msra.mxu0 0
      %1579 = vmatpush.bf16.msra.mxu0 0
      %1580 = vmatpush.bf16.msra.mxu0 0
      %1581 = vmatpush.bf16.msra.mxu0 0
      %1582 = vmatpush.bf16.msra.mxu0 0
      %1583 = vmatpush.bf16.msra.mxu0 0
      %1584 = vmatpush.bf16.msra.mxu0 %v1575
      %1585 = vmatmul.bf16.gmra.mxu0 %v1563
      %v1586 = vpop.f32.mrf.mxu0
      %v1587 = vadd.f32 0.0, %v1586
      %v1588 = vpop.f32.mrf.mxu0
      %v1589 = vadd.f32 0.0, %v1588
      %1590 = vmatmul.bf16.gmra.mxu0 %v1566
      %v1591 = vpop.f32.mrf.mxu0
      %v1592 = vadd.f32 0.0, %v1591
      %v1593 = vpop.f32.mrf.mxu0
      %v1594 = vadd.f32 0.0, %v1593
      %1595 = vmatmul.bf16.gmra.mxu0 %v1569
      %v1596 = vpop.f32.mrf.mxu0
      %v1597 = vadd.f32 0.0, %v1596
      %v1598 = vpop.f32.mrf.mxu0
      %v1599 = vadd.f32 0.0, %v1598
      %1600 = vmatmul.bf16.gmra.mxu0 %v1572
      %v1601 = vpop.f32.mrf.mxu0
      %v1602 = vadd.f32 0.0, %v1601
      %v1603 = vpop.f32.mrf.mxu0
      %v1604 = vadd.f32 0.0, %v1603
      %1605 = vdwg.mxu0
      %v1606 = vadd.f32 %v1546, %v1587
      %v1607 = vadd.f32 %v1547, %v1589
      %v1608 = vadd.f32 %v1548, %v1592
      %v1609 = vadd.f32 %v1549, %v1594
      %v1610 = vadd.f32 %v1550, %v1597
      %v1611 = vadd.f32 %v1551, %v1599
      %v1612 = vadd.f32 %v1552, %v1602
      %v1613 = vadd.f32 %v1553, %v1604
      %s1614 = scalar_lea.vmem %s2, 28
      %v1615 = vld [vmem:[%s1614] sm:$0xf]
      %v1617 = vunpack.c.l.b16 %v1192
      %v1618 = vpack.c.b16 %v1617, %v1557
      %v1620 = vsel %vm202, %v1618, 0
      %v1623 = vsel %vm215, %v1615, 0
      %1625 = vmatpush.bf16.msra.mxu0 0
      %1626 = vmatpush.bf16.msra.mxu0 0
      %1627 = vmatpush.bf16.msra.mxu0 0
      %1628 = vmatpush.bf16.msra.mxu0 0
      %1629 = vmatpush.bf16.msra.mxu0 0
      %1630 = vmatpush.bf16.msra.mxu0 0
      %1631 = vmatpush.bf16.msra.mxu0 0
      %1632 = vmatpush.bf16.msra.mxu0 %v1623
      %1633 = vmatmul.bf16.gmra.mxu0 %v1506
      %v1634 = vpop.f32.mrf.mxu0
      %v1635 = vadd.f32 0.0, %v1634
      %v1636 = vpop.f32.mrf.mxu0
      %v1637 = vadd.f32 0.0, %v1636
      %1638 = vmatmul.bf16.gmra.mxu0 %v1509
      %v1639 = vpop.f32.mrf.mxu0
      %v1640 = vadd.f32 0.0, %v1639
      %v1641 = vpop.f32.mrf.mxu0
      %v1642 = vadd.f32 0.0, %v1641
      %1643 = vmatmul.bf16.gmra.mxu0 %v1512
      %v1644 = vpop.f32.mrf.mxu0
      %v1645 = vadd.f32 0.0, %v1644
      %v1646 = vpop.f32.mrf.mxu0
      %v1647 = vadd.f32 0.0, %v1646
      %1648 = vmatmul.bf16.gmra.mxu0 %v1620
      %v1649 = vpop.f32.mrf.mxu0
      %v1650 = vadd.f32 0.0, %v1649
      %v1651 = vpop.f32.mrf.mxu0
      %v1652 = vadd.f32 0.0, %v1651
      %1653 = vdwg.mxu0
      %v1654 = vadd.f32 %v1606, %v1635
      %v1655 = vadd.f32 %v1607, %v1637
      %v1656 = vadd.f32 %v1608, %v1640
      %v1657 = vadd.f32 %v1609, %v1642
      %v1658 = vadd.f32 %v1610, %v1645
      %v1659 = vadd.f32 %v1611, %v1647
      %v1660 = vadd.f32 %v1612, %v1650
      %v1661 = vadd.f32 %v1613, %v1652
      %v1662 = vld [vmem:[#allocation2 + $0x4] sm:$0xf]
      %v1663 = vld [vmem:[#allocation2 + $0x8] sm:$0x1]
      %v1664 = vld [vmem:[#allocation2 + $0x10] sm:$0xf]
      %v1665 = vld [vmem:[#allocation2 + $0x14] sm:$0x1]
      %v1666 = vld [vmem:[#allocation2 + $0x1c] sm:$0xf]
      %v1667 = vld [vmem:[#allocation2 + $0x20] sm:$0x1]
      %v1668 = vld [vmem:[#allocation2 + $0x28] sm:$0xf]
      %v1669 = vld [vmem:[#allocation2 + $0x2c] sm:$0x1]
      %v1670 = vld [vmem:[#allocation2 + $0x34] sm:$0xf]
      %v1671 = vld [vmem:[#allocation2 + $0x38] sm:$0x1]
      %v1672 = vld [vmem:[#allocation2 + $0x40] sm:$0xf]
      %v1673 = vld [vmem:[#allocation2 + $0x44] sm:$0x1]
      %v1674 = vld [vmem:[#allocation2 + $0x4c] sm:$0xf]
      %v1675 = vld [vmem:[#allocation2 + $0x50] sm:$0x1]
      %v1676 = vld [vmem:[#allocation2 + $0x58] sm:$0xf]
      %v1677 = vld [vmem:[#allocation2 + $0x5c] sm:$0x1]
      %v1678 = vld [vmem:[#allocation2 + $0x64] sm:$0xf]
      %v1679 = vld [vmem:[#allocation2 + $0x68] sm:$0x1]
      %v1680 = vld [vmem:[#allocation2 + $0x70] sm:$0xf]
      %v1681 = vld [vmem:[#allocation2 + $0x74] sm:$0x1]
      %v1683 = vshrl.u32 %v1662, 16
      %v1685 = vrot.slane %v1683, 4
      %v1686 = vshll.u32 %v1662, 16
      %v1688 = vrot.slane %v1686, 5
      %v1689 = vor.u32 %v1685, %v1688
      %v1690 = vrot.slane %v1689, 4
      %v1692 = vshll.u32 %v1663, 16
      %v1694 = vrot.slane %v1692, 5
      %v1695 = vsel %vm628, %v1690, %v1694
      %v1697 = vshrl.u32 %v1664, 16
      %v1699 = vrot.slane %v1697, 4
      %v1700 = vshll.u32 %v1664, 16
      %v1702 = vrot.slane %v1700, 5
      %v1703 = vor.u32 %v1699, %v1702
      %v1704 = vrot.slane %v1703, 4
      %v1706 = vshll.u32 %v1665, 16
      %v1708 = vrot.slane %v1706, 5
      %v1709 = vsel %vm628, %v1704, %v1708
      %v1711 = vshrl.u32 %v1666, 16
      %v1713 = vrot.slane %v1711, 4
      %v1714 = vshll.u32 %v1666, 16
      %v1716 = vrot.slane %v1714, 5
      %v1717 = vor.u32 %v1713, %v1716
      %v1718 = vrot.slane %v1717, 4
      %v1720 = vshll.u32 %v1667, 16
      %v1722 = vrot.slane %v1720, 5
      %v1723 = vsel %vm628, %v1718, %v1722
      %v1725 = vshrl.u32 %v1668, 16
      %v1727 = vrot.slane %v1725, 4
      %v1728 = vshll.u32 %v1668, 16
      %v1730 = vrot.slane %v1728, 5
      %v1731 = vor.u32 %v1727, %v1730
      %v1732 = vrot.slane %v1731, 4
      %v1734 = vshll.u32 %v1669, 16
      %v1736 = vrot.slane %v1734, 5
      %v1737 = vsel %vm628, %v1732, %v1736
      %v1739 = vshrl.u32 %v1670, 16
      %v1741 = vrot.slane %v1739, 4
      %v1742 = vshll.u32 %v1670, 16
      %v1744 = vrot.slane %v1742, 5
      %v1745 = vor.u32 %v1741, %v1744
      %v1746 = vrot.slane %v1745, 4
      %v1748 = vshll.u32 %v1671, 16
      %v1750 = vrot.slane %v1748, 5
      %v1751 = vsel %vm628, %v1746, %v1750
      %v1753 = vshrl.u32 %v1672, 16
      %v1755 = vrot.slane %v1753, 4
      %v1756 = vshll.u32 %v1672, 16
      %v1758 = vrot.slane %v1756, 5
      %v1759 = vor.u32 %v1755, %v1758
      %v1760 = vrot.slane %v1759, 4
      %v1762 = vshll.u32 %v1673, 16
      %v1764 = vrot.slane %v1762, 5
      %v1765 = vsel %vm628, %v1760, %v1764
      %v1767 = vshrl.u32 %v1674, 16
      %v1769 = vrot.slane %v1767, 4
      %v1770 = vshll.u32 %v1674, 16
      %v1772 = vrot.slane %v1770, 5
      %v1773 = vor.u32 %v1769, %v1772
      %v1774 = vrot.slane %v1773, 4
      %v1776 = vshll.u32 %v1675, 16
      %v1778 = vrot.slane %v1776, 5
      %v1779 = vsel %vm628, %v1774, %v1778
      %v1781 = vshrl.u32 %v1676, 16
      %v1783 = vrot.slane %v1781, 4
      %v1784 = vshll.u32 %v1676, 16
      %v1786 = vrot.slane %v1784, 5
      %v1787 = vor.u32 %v1783, %v1786
      %v1788 = vrot.slane %v1787, 4
      %v1790 = vshll.u32 %v1677, 16
      %v1792 = vrot.slane %v1790, 5
      %v1793 = vsel %vm628, %v1788, %v1792
      %s1794 = scalar_lea.vmem %s2, 8
      %v1795 = vld [vmem:[%s1794] sm:$0xf]
      %v1796 = vunpack.c.l.b16 %v1695
      %v1797 = vunpack.c.l.b16 %v1709
      %v1798 = vunpack.c.l.b16 %v1723
      %v1799 = vunpack.c.l.b16 %v1737
      %v1800 = vunpack.c.l.b16 %v1751
      %v1801 = vunpack.c.l.b16 %v1765
      %v1802 = vunpack.c.l.b16 %v1779
      %v1803 = vunpack.c.l.b16 %v1793
      %v1804 = vpack.c.b16 %v1797, %v1796
      %v1805 = vpack.c.b16 %v1799, %v1798
      %v1806 = vpack.c.b16 %v1801, %v1800
      %v1807 = vpack.c.b16 %v1803, %v1802
      %v1809 = vsel %vm202, %v1804, 0
      %v1812 = vsel %vm202, %v1805, 0
      %v1815 = vsel %vm202, %v1806, 0
      %v1818 = vsel %vm202, %v1807, 0
      %v1821 = vsel %vm215, %v1795, 0
      %1823 = vmatpush.bf16.msra.mxu0 0
      %1824 = vmatpush.bf16.msra.mxu0 0
      %1825 = vmatpush.bf16.msra.mxu0 0
      %1826 = vmatpush.bf16.msra.mxu0 0
      %1827 = vmatpush.bf16.msra.mxu0 0
      %1828 = vmatpush.bf16.msra.mxu0 0
      %1829 = vmatpush.bf16.msra.mxu0 0
      %1830 = vmatpush.bf16.msra.mxu0 %v1821
      %1831 = vmatmul.bf16.gmra.mxu0 %v1809
      %v1832 = vpop.f32.mrf.mxu0
      %v1833 = vadd.f32 0.0, %v1832
      %v1834 = vpop.f32.mrf.mxu0
      %v1835 = vadd.f32 0.0, %v1834
      %1836 = vmatmul.bf16.gmra.mxu0 %v1812
      %v1837 = vpop.f32.mrf.mxu0
      %v1838 = vadd.f32 0.0, %v1837
      %v1839 = vpop.f32.mrf.mxu0
      %v1840 = vadd.f32 0.0, %v1839
      %1841 = vmatmul.bf16.gmra.mxu0 %v1815
      %v1842 = vpop.f32.mrf.mxu0
      %v1843 = vadd.f32 0.0, %v1842
      %v1844 = vpop.f32.mrf.mxu0
      %v1845 = vadd.f32 0.0, %v1844
      %1846 = vmatmul.bf16.gmra.mxu0 %v1818
      %v1847 = vpop.f32.mrf.mxu0
      %v1848 = vadd.f32 0.0, %v1847
      %v1849 = vpop.f32.mrf.mxu0
      %v1850 = vadd.f32 0.0, %v1849
      %1851 = vdwg.mxu0
      %v1852 = vadd.f32 %v1654, %v1833
      %v1853 = vadd.f32 %v1655, %v1835
      %v1854 = vadd.f32 %v1656, %v1838
      %v1855 = vadd.f32 %v1657, %v1840
      %v1856 = vadd.f32 %v1658, %v1843
      %v1857 = vadd.f32 %v1659, %v1845
      %v1858 = vadd.f32 %v1660, %v1848
      %v1859 = vadd.f32 %v1661, %v1850
      %v1861 = vshrl.u32 %v1678, 16
      %v1863 = vrot.slane %v1861, 4
      %v1864 = vshll.u32 %v1678, 16
      %v1866 = vrot.slane %v1864, 5
      %v1867 = vor.u32 %v1863, %v1866
      %v1868 = vrot.slane %v1867, 4
      %v1870 = vshll.u32 %v1679, 16
      %v1872 = vrot.slane %v1870, 5
      %v1873 = vsel %vm628, %v1868, %v1872
      %s1874 = scalar_lea.vmem %s2, 20
      %v1875 = vld [vmem:[%s1874] sm:$0xf]
      %v1876 = vunpack.c.l.b16 %v1873
      %v1877 = vpack.c.b16 %v1798, %v1797
      %v1878 = vpack.c.b16 %v1800, %v1799
      %v1879 = vpack.c.b16 %v1802, %v1801
      %v1880 = vpack.c.b16 %v1876, %v1803
      %v1882 = vsel %vm202, %v1877, 0
      %v1885 = vsel %vm202, %v1878, 0
      %v1888 = vsel %vm202, %v1879, 0
      %v1891 = vsel %vm202, %v1880, 0
      %v1894 = vsel %vm215, %v1875, 0
      %1896 = vmatpush.bf16.msra.mxu0 0
      %1897 = vmatpush.bf16.msra.mxu0 0
      %1898 = vmatpush.bf16.msra.mxu0 0
      %1899 = vmatpush.bf16.msra.mxu0 0
      %1900 = vmatpush.bf16.msra.mxu0 0
      %1901 = vmatpush.bf16.msra.mxu0 0
      %1902 = vmatpush.bf16.msra.mxu0 0
      %1903 = vmatpush.bf16.msra.mxu0 %v1894
      %1904 = vmatmul.bf16.gmra.mxu0 %v1882
      %v1905 = vpop.f32.mrf.mxu0
      %v1906 = vadd.f32 0.0, %v1905
      %v1907 = vpop.f32.mrf.mxu0
      %v1908 = vadd.f32 0.0, %v1907
      %1909 = vmatmul.bf16.gmra.mxu0 %v1885
      %v1910 = vpop.f32.mrf.mxu0
      %v1911 = vadd.f32 0.0, %v1910
      %v1912 = vpop.f32.mrf.mxu0
      %v1913 = vadd.f32 0.0, %v1912
      %1914 = vmatmul.bf16.gmra.mxu0 %v1888
      %v1915 = vpop.f32.mrf.mxu0
      %v1916 = vadd.f32 0.0, %v1915
      %v1917 = vpop.f32.mrf.mxu0
      %v1918 = vadd.f32 0.0, %v1917
      %1919 = vmatmul.bf16.gmra.mxu0 %v1891
      %v1920 = vpop.f32.mrf.mxu0
      %v1921 = vadd.f32 0.0, %v1920
      %v1922 = vpop.f32.mrf.mxu0
      %v1923 = vadd.f32 0.0, %v1922
      %1924 = vdwg.mxu0
      %v1925 = vadd.f32 %v1852, %v1906
      %v1926 = vadd.f32 %v1853, %v1908
      %v1927 = vadd.f32 %v1854, %v1911
      %v1928 = vadd.f32 %v1855, %v1913
      %v1929 = vadd.f32 %v1856, %v1916
      %v1930 = vadd.f32 %v1857, %v1918
      %v1931 = vadd.f32 %v1858, %v1921
      %v1932 = vadd.f32 %v1859, %v1923
      %v1934 = vshrl.u32 %v1680, 16
      %v1936 = vrot.slane %v1934, 4
      %v1937 = vshll.u32 %v1680, 16
      %v1939 = vrot.slane %v1937, 5
      %v1940 = vor.u32 %v1936, %v1939
      %v1941 = vrot.slane %v1940, 4
      %v1943 = vshll.u32 %v1681, 16
      %v1945 = vrot.slane %v1943, 5
      %v1946 = vsel %vm628, %v1941, %v1945
      %s1947 = scalar_lea.vmem %s2, 32
      %v1948 = vld [vmem:[%s1947] sm:$0xf]
      %v1949 = vunpack.c.l.b16 %v1946
      %v1950 = vpack.c.b16 %v1949, %v1876
      %v1952 = vsel %vm202, %v1950, 0
      %v1955 = vsel %vm215, %v1948, 0
      %1957 = vmatpush.bf16.msra.mxu0 0
      %1958 = vmatpush.bf16.msra.mxu0 0
      %1959 = vmatpush.bf16.msra.mxu0 0
      %1960 = vmatpush.bf16.msra.mxu0 0
      %1961 = vmatpush.bf16.msra.mxu0 0
      %1962 = vmatpush.bf16.msra.mxu0 0
      %1963 = vmatpush.bf16.msra.mxu0 0
      %1964 = vmatpush.bf16.msra.mxu0 %v1955
      %1965 = vmatmul.bf16.gmra.mxu0 %v1812
      %v1966 = vpop.f32.mrf.mxu0
      %v1967 = vadd.f32 0.0, %v1966
      %v1968 = vpop.f32.mrf.mxu0
      %v1969 = vadd.f32 0.0, %v1968
      %1970 = vmatmul.bf16.gmra.mxu0 %v1815
      %v1971 = vpop.f32.mrf.mxu0
      %v1972 = vadd.f32 0.0, %v1971
      %v1973 = vpop.f32.mrf.mxu0
      %v1974 = vadd.f32 0.0, %v1973
      %1975 = vmatmul.bf16.gmra.mxu0 %v1818
      %v1976 = vpop.f32.mrf.mxu0
      %v1977 = vadd.f32 0.0, %v1976
      %v1978 = vpop.f32.mrf.mxu0
      %v1979 = vadd.f32 0.0, %v1978
      %1980 = vmatmul.bf16.gmra.mxu0 %v1952
      %v1981 = vpop.f32.mrf.mxu0
      %v1982 = vadd.f32 0.0, %v1981
      %v1983 = vpop.f32.mrf.mxu0
      %v1984 = vadd.f32 0.0, %v1983
      %1985 = vdwg.mxu0
      %v1986 = vadd.f32 %v1925, %v1967
      %v1987 = vadd.f32 %v1926, %v1969
      %v1988 = vadd.f32 %v1927, %v1972
      %v1989 = vadd.f32 %v1928, %v1974
      %v1990 = vadd.f32 %v1929, %v1977
      %v1991 = vadd.f32 %v1930, %v1979
      %v1992 = vadd.f32 %v1931, %v1982
      %v1993 = vadd.f32 %v1932, %v1984
      %v1994 = vsel %vm202, %v1986, 0.0
      %v1995 = vsel %vm202, %v1987, 0.0
      %v1996 = vadd.f32 %v1994, %v1995
      %v1997 = vsel %vm202, %v1988, 0.0
      %v1998 = vadd.f32 %v1996, %v1997
      %v1999 = vsel %vm202, %v1989, 0.0
      %v2000 = vadd.f32 %v1998, %v1999
      %v2001 = vsel %vm202, %v1990, 0.0
      %v2002 = vadd.f32 %v2000, %v2001
      %v2003 = vsel %vm202, %v1991, 0.0
      %v2004 = vadd.f32 %v2002, %v2003
      %v2005 = vsel %vm202, %v1992, 0.0
      %v2006 = vadd.f32 %v2004, %v2005
      %v2007 = vsel %vm202, %v1993, 0.0
      %v2008 = vadd.f32 %v2006, %v2007
      %v2009 = vrot.slane %v2008, 4
      %v2010 = vadd.f32 %v2008, %v2009
      %v2011 = vrot.slane %v2010, 2
      %v2012 = vadd.f32 %v2010, %v2011
      %v2013 = vrot.slane %v2012, 1
      %v2014 = vadd.f32 %v2012, %v2013
      %v2015 = vmul.f32 %v2014, 0.015625
      %v2016 = vsub.f32 %v1986, %v2015
      %v2017 = vsub.f32 %v1987, %v2015
      %v2018 = vsub.f32 %v1988, %v2015
      %v2019 = vsub.f32 %v1989, %v2015
      %v2020 = vsub.f32 %v1990, %v2015
      %v2021 = vsub.f32 %v1991, %v2015
      %v2022 = vsub.f32 %v1992, %v2015
      %v2023 = vsub.f32 %v1993, %v2015
      %v2024 = vmul.f32 %v2016, %v2016
      %v2025 = vmul.f32 %v2017, %v2017
      %v2026 = vmul.f32 %v2018, %v2018
      %v2027 = vmul.f32 %v2019, %v2019
      %v2028 = vmul.f32 %v2020, %v2020
      %v2029 = vmul.f32 %v2021, %v2021
      %v2030 = vmul.f32 %v2022, %v2022
      %v2031 = vmul.f32 %v2023, %v2023
      %v2032 = vsel %vm202, %v2024, 0.0
      %v2033 = vsel %vm202, %v2025, 0.0
      %v2034 = vadd.f32 %v2032, %v2033
      %v2035 = vsel %vm202, %v2026, 0.0
      %v2036 = vadd.f32 %v2034, %v2035
      %v2037 = vsel %vm202, %v2027, 0.0
      %v2038 = vadd.f32 %v2036, %v2037
      %v2039 = vsel %vm202, %v2028, 0.0
      %v2040 = vadd.f32 %v2038, %v2039
      %v2041 = vsel %vm202, %v2029, 0.0
      %v2042 = vadd.f32 %v2040, %v2041
      %v2043 = vsel %vm202, %v2030, 0.0
      %v2044 = vadd.f32 %v2042, %v2043
      %v2045 = vsel %vm202, %v2031, 0.0
      %v2046 = vadd.f32 %v2044, %v2045
      %v2047 = vrot.slane %v2046, 4
      %v2048 = vadd.f32 %v2046, %v2047
      %v2049 = vrot.slane %v2048, 2
      %v2050 = vadd.f32 %v2048, %v2049
      %v2051 = vrot.slane %v2050, 1
      %v2052 = vadd.f32 %v2050, %v2051
      %v2053 = vmul.f32 %v2052, 0.015625
      %v2054 = vadd.f32 %v2053, 1e-05
      %v2055 = vrsqrt.pop %v2054
      %v2056 = vmul.f32 %v2055, %v2054
      %v2057 = vmul.f32 %v2056, %v2055
      %v2058 = vmul.f32 0.5, %v2057
      %v2059 = vsub.f32 1.5, %v2058
      %v2060 = vmul.f32 %v2055, %v2059
      %vm2061 = vweird.f32 %v2054
      %vm2062 = vweird.f32 %v2055
      %vm2063 = vmor %vm2061, %vm2062
      %v2064 = vsel %vm2063, %v2055, %v2060
      %v2065 = vmul.f32 %v2016, %v2064
      %v2066 = vmul.f32 %v2017, %v2064
      %v2067 = vmul.f32 %v2018, %v2064
      %v2068 = vmul.f32 %v2019, %v2064
      %v2069 = vmul.f32 %v2020, %v2064
      %v2070 = vmul.f32 %v2021, %v2064
      %v2071 = vmul.f32 %v2022, %v2064
      %v2072 = vmul.f32 %v2023, %v2064
      %vm2073 = vcmp.gt.f32.partialorder %v2065, 0.0
      %vm2074 = vcmp.gt.f32.partialorder %v2066, 0.0
      %vm2075 = vcmp.gt.f32.partialorder %v2067, 0.0
      %vm2076 = vcmp.gt.f32.partialorder %v2068, 0.0
      %vm2077 = vcmp.gt.f32.partialorder %v2069, 0.0
      %vm2078 = vcmp.gt.f32.partialorder %v2070, 0.0
      %vm2079 = vcmp.gt.f32.partialorder %v2071, 0.0
      %vm2080 = vcmp.gt.f32.partialorder %v2072, 0.0
      %v2081 = vmul.f32 %v2065, 0.01
      %v2082 = vmul.f32 %v2066, 0.01
      %v2083 = vmul.f32 %v2067, 0.01
      %v2084 = vmul.f32 %v2068, 0.01
      %v2085 = vmul.f32 %v2069, 0.01
      %v2086 = vmul.f32 %v2070, 0.01
      %v2087 = vmul.f32 %v2071, 0.01
      %v2088 = vmul.f32 %v2072, 0.01
      %v2089 = vsel %vm2073, %v2065, %v2081
      %v2090 = vsel %vm2074, %v2066, %v2082
      %v2091 = vsel %vm2075, %v2067, %v2083
      %v2092 = vsel %vm2076, %v2068, %v2084
      %v2093 = vsel %vm2077, %v2069, %v2085
      %v2094 = vsel %vm2078, %v2070, %v2086
      %v2095 = vsel %vm2079, %v2071, %v2087
      %v2096 = vsel %vm2080, %v2072, %v2088
      %2097 = vxpose.xlu0.b32.start [1/16] %v2089, 128
      %2098 = vxpose.xlu0.b32.cont [2/16] %v2090, 128
      %2099 = vxpose.xlu0.b32.cont [3/16] %v2091, 128
      %2100 = vxpose.xlu0.b32.cont [4/16] %v2092, 128
      %2101 = vxpose.xlu0.b32.cont [5/16] %v2093, 128
      %2102 = vxpose.xlu0.b32.cont [6/16] %v2094, 128
      %2103 = vxpose.xlu0.b32.cont [7/16] %v2095, 128
      %2104 = vxpose.xlu0.b32.cont [8/16] %v2096, 128
      %2105 = vxpose.xlu0.b32.cont [9/16] 0.0, 128
      %2106 = vxpose.xlu0.b32.cont [10/16] 0.0, 128
      %2107 = vxpose.xlu0.b32.cont [11/16] 0.0, 128
      %2108 = vxpose.xlu0.b32.cont [12/16] 0.0, 128
      %2109 = vxpose.xlu0.b32.cont [13/16] 0.0, 128
      %2110 = vxpose.xlu0.b32.cont [14/16] 0.0, 128
      %2111 = vxpose.xlu0.b32.cont [15/16] 0.0, 128
      %2112 = vxpose.xlu0.b32.end [16/16] 0.0, 128
      %v2113 = vpop.trf.xlu0
      %v2114 = vpop.trf.xlu0
      %v2115 = vpop.trf.xlu0
      %v2116 = vpop.trf.xlu0
      %v2117 = vpop.trf.xlu0
      %v2118 = vpop.trf.xlu0
      %v2119 = vpop.trf.xlu0
      %v2120 = vpop.trf.xlu0
      %v2121 = vpop.trf.xlu0
      %v2122 = vpop.trf.xlu0
      %v2123 = vpop.trf.xlu0
      %v2124 = vpop.trf.xlu0
      %v2125 = vpop.trf.xlu0
      %v2126 = vpop.trf.xlu0
      %v2127 = vpop.trf.xlu0
      %v2128 = vpop.trf.xlu0
      %vm2129 = vcmask 523264
      %2130 = vst.msk [vmem:[%s168] sm:$0xff] %vm2129, %v2113
      %p2131 = scmp.lt.s32.totalorder %s14, 1
      %s2132 = scalar_select %p2131, %s14, 1
      %s2133 = smul.addr %s2132, 8
      %s2134 = scalar_lea.vmem %s3, %s2133
      // Predicated region
      $region33: #{downsample2d_pallas.1} parent=31 // pred_check
        %p2135 = pneg %p100
      $region34: #{downsample2d_pallas.1} parent=31 // pred_check_branch
        %2137 = sbr.rel (%p2135) target = $region36
      $region35: #{downsample2d_pallas.1} parent=31 // pred_region
        _
      $region36: #{downsample2d_pallas.1} parent=31 // pred_fallthru
        _
    $region32: #{downsample2d_pallas.1} parent=5 // pred_fallthru
      _
    %p2138 = scmp.le.s32.totalorder 2, %s9
    // Predicated region
    $region37: #{downsample2d_pallas.1} parent=5 // pred_check
      %p2139 = pneg %p2138
    $region38: #{downsample2d_pallas.1} parent=5 // pred_check_branch
      %2141 = sbr.rel (%p2139) target = $region40
    $region39: #{downsample2d_pallas.1} parent=5 // pred_region
      %s2142 = ssub.s32 %s9, 2
      // Predicated region
      $region41: #{downsample2d_pallas.1} parent=39 // pred_check
        %p2143 = pneg %p106
      $region42: #{downsample2d_pallas.1} parent=39 // pred_check_branch
        %2145 = sbr.rel (%p2143) target = $region44
      $region43: #{downsample2d_pallas.1} parent=39 // pred_region
        %p2146 = scmp.lt.s32.totalorder %s15, 1
        %s2147 = scalar_select %p2146, %s15, 1
        %s2148 = smul.addr %s2147, 8
        %s2149 = scalar_lea.vmem %s3, %s2148
      $region44: #{downsample2d_pallas.1} parent=39 // pred_fallthru
        _
    $region40: #{downsample2d_pallas.1} parent=5 // pred_fallthru
      _
  $region6: #{downsample2d_pallas.1} parent=0 // loop_footer
    %s13 = sadd.s32 1, %s9
  $region7: #{downsample2d_pallas.1} parent=0 // loop_footer_branch
    %8 = sbr.rel target = $region3
  $region8: #{downsample2d_pallas.1} parent=0 // loop_exit
    _

</llo_original>
